<compile_context>
chip_gen: v7x
topology: tpu7x:2x2x1
jax: 0.10.0
libtpu: 0.0.40
codegen_flags: <defaults>
</compile_context>

<pallas_src>
import functools

import jax
import jax.numpy as jnp
import numpy as np
from jax import lax
from jax.experimental import pallas as pl
from jax.experimental.pallas import tpu as pltpu


def gru_kernel(gi_ref, h0_ref, whh_ref, bhn_ref, out_ref, h_scratch,
               *, hidden_pad, t_chunk, mxu_dtype):
    Hp = hidden_pad
    tc = pl.program_id(1)

    @pl.when(tc == 0)
    def _():
        h_scratch[...] = h0_ref[...]

    def step(i, h):
        # gi already contains x W_ih^T + b_ih + [b_hr, b_hz, 0] (precomputed).
        gi = gi_ref[i]                                        # (B_BLK, 3Hp)
        gh = jnp.dot(h.astype(mxu_dtype), whh_ref[...],       # recurrent MXU matmul
                     preferred_element_type=jnp.float32)      # (B_BLK, 3Hp)
        r = jax.nn.sigmoid(gi[:, :Hp] + gh[:, :Hp])
        z = jax.nn.sigmoid(gi[:, Hp:2 * Hp] + gh[:, Hp:2 * Hp])
        n = jnp.tanh(gi[:, 2 * Hp:] + r * (gh[:, 2 * Hp:] + bhn_ref[...]))
        h_new = n + z * (h - n)
        out_ref[i] = h_new
        return h_new

    h_final = lax.fori_loop(0, t_chunk, step, h_scratch[...], unroll=True)
    h_scratch[...] = h_final


def _round_up(x, m):
    return ((x + m - 1) // m) * m


def _pad_gate_cols(a, H, Hp):
    """Pad the last axis (3H, gate-stacked [r|z|n]) to 3*Hp, per gate, so gate
    boundaries land on Hp (128-lane) multiples."""
    gates = [a[..., i * H:(i + 1) * H] for i in range(3)]
    pad = [(0, 0)] * (a.ndim - 1) + [(0, Hp - H)]
    return jnp.concatenate([jnp.pad(g, pad) for g in gates], axis=-1)


def gru_forward_pallas(inputs, h0, w_ih, w_hh, b_ih, b_hh, *,
                       t_chunk=16, batch_block=8, mxu_dtype=jnp.float32):
    """inputs: (B, T, D) batch-first; h0: (1, B, H).

    Returns (output (B, T, H), hidden_state (1, B, H)) like nn.GRU(batch_first=True).
    """
    f32 = jnp.float32
    B, T, D = inputs.shape
    H = h0.shape[-1]

    Hp = _round_up(H, 128)           # lane-pad hidden
    Bp = _round_up(B, batch_block)   # sublane-pad batch
    Tp = _round_up(T, t_chunk)

    x = inputs.astype(f32)

    # ---- weights / biases with gate-aligned padding ----
    wih_pad = _pad_gate_cols(w_ih.T.astype(f32), H, Hp).astype(mxu_dtype)    # (D, 3Hp)
    whh_pad = _pad_gate_cols(w_hh.T.astype(f32), H, Hp)                      # (H, 3Hp)
    whh_pad = jnp.pad(whh_pad, ((0, Hp - H), (0, 0))).astype(mxu_dtype)      # (Hp, 3Hp)
    # Fold b_ih (all gates) and b_hh's r/z parts into the hoisted input
    # projection; only b_hn stays in-kernel: n = tanh(i_n + r * (h_n + b_hn)).
    bias_fold = b_ih.astype(f32) + jnp.concatenate(
        [b_hh[:2 * H].astype(f32), jnp.zeros((H,), f32)])
    bias_pad = _pad_gate_cols(bias_fold, H, Hp)                              # (3Hp,)
    bhn_pad = jnp.pad(b_hh[2 * H:].astype(f32), (0, Hp - H)).reshape(1, Hp)  # (1, Hp)

    # ---- hoisted input projection: one big MXU matmul over all timesteps ----
    gi = jnp.einsum("btd,dg->tbg", x.astype(mxu_dtype), wih_pad,
                    preferred_element_type=f32) + bias_pad                   # (T, B, 3Hp)
    gi = jnp.pad(gi, ((0, Tp - T), (0, Bp - B), (0, 0)))                     # (Tp, Bp, 3Hp)

    h0_pad = jnp.pad(h0[0].astype(f32), ((0, Bp - B), (0, Hp - H)))          # (Bp, Hp)

    grid = (Bp // batch_block, Tp // t_chunk)

    out_tm = pl.pallas_call(
        functools.partial(gru_kernel, hidden_pad=Hp, t_chunk=t_chunk,
                          mxu_dtype=mxu_dtype),
        out_shape=jax.ShapeDtypeStruct((Tp, Bp, Hp), f32),
        grid_spec=pltpu.PrefetchScalarGridSpec(
            num_scalar_prefetch=0,
            grid=grid,
            in_specs=[
                pl.BlockSpec((t_chunk, batch_block, 3 * Hp), lambda b, t: (t, b, 0)),  # gi slab
                pl.BlockSpec((batch_block, Hp), lambda b, t: (b, 0)),                  # h0
                pl.BlockSpec((Hp, 3 * Hp), lambda b, t: (0, 0)),                       # W_hh^T (resident)
                pl.BlockSpec((1, Hp), lambda b, t: (0, 0)),                            # b_hn
            ],
            out_specs=pl.BlockSpec((t_chunk, batch_block, Hp), lambda b, t: (t, b, 0)),
            scratch_shapes=[pltpu.VMEM((batch_block, Hp), f32)],                       # carried h
        ),
        compiler_params=pltpu.CompilerParams(
            dimension_semantics=("parallel", "arbitrary"),   # batch across cores, time sequential
            vmem_limit_bytes=32 * 1024 * 1024,
        ),
    )(gi, h0_pad, whh_pad, bhn_pad)

    out = jnp.transpose(out_tm[:T, :B, :H], (1, 0, 2)).astype(inputs.dtype)  # (B, T, H)
    # Single layer, unidirectional, full-length sequences (mask=None):
    # final hidden state == last timestep's output.
    hidden_state = out[:, T - 1, :][None]                                    # (1, B, H)
    return out, hidden_state


def gru_forward_ref(inputs, h0, w_ih, w_hh, b_ih, b_hh):
    """Pure-JAX reference (lax.scan) matching torch.nn.GRU(batch_first=True)."""
    H = h0.shape[-1]

    def cell(h, x_t):
        gi = x_t @ w_ih.T + b_ih
        gh = h @ w_hh.T + b_hh
        r = jax.nn.sigmoid(gi[:, :H] + gh[:, :H])
        z = jax.nn.sigmoid(gi[:, H:2 * H] + gh[:, H:2 * H])
        n = jnp.tanh(gi[:, 2 * H:] + r * gh[:, 2 * H:])
        h_new = (1.0 - z) * n + z * h
        return h_new, h_new

    x_tm = jnp.transpose(inputs, (1, 0, 2))
    hT, out_tm = lax.scan(cell, h0[0], x_tm)
    return jnp.transpose(out_tm, (1, 0, 2)), hT[None, :, :]


if __name__ == "__main__":
    # Module hyper-params (num_layers=1, bidirectional=False, _module=nn.GRU)
    input_dim, hidden_dim = 16, 32
    B, T = 2, 8

    key = jax.random.PRNGKey(0)
    k_x, k_wih, k_whh, k_bih, k_bhh = jax.random.split(key, 5)

    # Deterministic param init, U(-1/sqrt(H), 1/sqrt(H)) like PyTorch GRU.
    bound = 1.0 / np.sqrt(hidden_dim)
    w_ih = jax.random.uniform(k_wih, (3 * hidden_dim, input_dim), jnp.float32, -bound, bound)
    w_hh = jax.random.uniform(k_whh, (3 * hidden_dim, hidden_dim), jnp.float32, -bound, bound)
    b_ih = jax.random.uniform(k_bih, (3 * hidden_dim,), jnp.float32, -bound, bound)
    b_hh = jax.random.uniform(k_bhh, (3 * hidden_dim,), jnp.float32, -bound, bound)

    inputs = jax.random.normal(k_x, (B, T, input_dim), jnp.float32)
    h0 = jnp.zeros((1, B, hidden_dim), jnp.float32)   # hidden_state=None default

    # t_chunk=4 -> 2 time chunks, exercising the cross-grid-step h carry.
    out, h_final = gru_forward_pallas(inputs, h0, w_ih, w_hh, b_ih, b_hh, t_chunk=4)
    jax.block_until_ready((out, h_final))

    out_ref, h_ref = gru_forward_ref(inputs, h0, w_ih, w_hh, b_ih, b_hh)
    np.testing.assert_allclose(np.asarray(out), np.asarray(out_ref), atol=1e-4, rtol=1e-4)
    np.testing.assert_allclose(np.asarray(h_final), np.asarray(h_ref), atol=1e-4, rtol=1e-4)

    print("KERNEL_OK")
</pallas_src>

<mosaic_0001>
module attributes {stable_mosaic.version = 11 : i64} {
  func.func @gru_kernel(%arg0: i32, %arg1: i32, %arg2: memref<4x8x384xf32, #tpu.memory_space<vmem>>, %arg3: memref<8x128xf32, #tpu.memory_space<vmem>>, %arg4: memref<128x384xf32, #tpu.memory_space<vmem>>, %arg5: memref<1x128xf32, #tpu.memory_space<vmem>>, %arg6: memref<4x8x128xf32, #tpu.memory_space<vmem>>, %arg7: memref<8x128xf32, #tpu.memory_space<vmem>>) attributes {dimension_semantics = [#tpu.dimension_semantics<parallel>, #tpu.dimension_semantics<arbitrary>], iteration_bounds = array<i64: 1, 2>, scalar_prefetch = 0 : i64, scratch_operands = 1 : i64, tpu.core_type = #tpu.core_type<tc>, window_params = [{transform_indices = @transform_0, window_bounds = array<i64: 4, 8, 384>}, {transform_indices = @transform_1, window_bounds = array<i64: 8, 128>}, {pipeline_mode = #tpu.pipeline_mode<synchronous>, transform_indices = @transform_2, window_bounds = array<i64: 128, 384>}, {pipeline_mode = #tpu.pipeline_mode<synchronous>, transform_indices = @transform_3, window_bounds = array<i64: 1, 128>}, {transform_indices = @transform_4, window_bounds = array<i64: 4, 8, 128>}]} {
    %c0_i32 = arith.constant 0 : i32
    %0 = arith.cmpi eq, %arg1, %c0_i32 : i32
    %1 = arith.extui %0 : i1 to i32
    %c0_i32_0 = arith.constant 0 : i32
    %2 = arith.cmpi ne, %1, %c0_i32_0 : i32
    scf.if %2 {
      %c0_48 = arith.constant 0 : index
      %c0_49 = arith.constant 0 : index
      %149 = vector.load %arg3[%c0_48, %c0_49] : memref<8x128xf32, #tpu.memory_space<vmem>>, vector<8x128xf32>
      %c0_50 = arith.constant 0 : index
      %c0_51 = arith.constant 0 : index
      %150 = vector.load %arg7[%c0_50, %c0_51] : memref<8x128xf32, #tpu.memory_space<vmem>>, vector<8x128xf32>
      tpu.vector_store %arg7[%c0_50, %c0_51], %149 {strides = array<i32>} : memref<8x128xf32, #tpu.memory_space<vmem>>, vector<8x128xf32>,
    } else {
    }
    %c0 = arith.constant 0 : index
    %c0_1 = arith.constant 0 : index
    %3 = vector.load %arg7[%c0, %c0_1] : memref<8x128xf32, #tpu.memory_space<vmem>>, vector<8x128xf32>
    %c0_i32_2 = arith.constant 0 : i32
    %4 = arith.index_cast %c0_i32_2 : i32 to index
    %c0_3 = arith.constant 0 : index
    %c0_4 = arith.constant 0 : index
    %5 = vector.load %arg2[%4, %c0_3, %c0_4] : memref<4x8x384xf32, #tpu.memory_space<vmem>>, vector<1x8x384xf32>
    %6 = vector.shape_cast %5 : vector<1x8x384xf32> to vector<8x384xf32>
    %c0_5 = arith.constant 0 : index
    %c0_6 = arith.constant 0 : index
    %7 = vector.load %arg4[%c0_5, %c0_6] : memref<128x384xf32, #tpu.memory_space<vmem>>, vector<128x384xf32>
    %cst = arith.constant dense<0.000000e+00> : vector<8x384xf32>
    %8 = tpu.matmul %3, %7, %cst {dimension_numbers = #tpu.dot_dimension_numbers<[1], [0], [0], [1], [0, 0, 1, 1], [], []>} : vector<8x128xf32>, vector<128x384xf32>, vector<8x384xf32> -> vector<8x384xf32>
    %9 = vector.extract_strided_slice %6 {offsets = [0, 0], sizes = [8, 128], strides = [1, 1]} : vector<8x384xf32> to vector<8x128xf32>
    %10 = vector.extract_strided_slice %8 {offsets = [0, 0], sizes = [8, 128], strides = [1, 1]} : vector<8x384xf32> to vector<8x128xf32>
    %11 = arith.addf %9, %10 : vector<8x128xf32>
    %12 = arith.negf %11 : vector<8x128xf32>
    %13 = math.exp %12 : vector<8x128xf32>
    %cst_7 = arith.constant 1.000000e+00 : f32
    %14 = vector.broadcast %cst_7 : f32 to vector<8x128xf32>
    %15 = arith.addf %14, %13 : vector<8x128xf32>
    %16 = arith.divf %14, %15 : vector<8x128xf32>
    %17 = vector.extract_strided_slice %6 {offsets = [0, 128], sizes = [8, 128], strides = [1, 1]} : vector<8x384xf32> to vector<8x128xf32>
    %18 = vector.extract_strided_slice %8 {offsets = [0, 128], sizes = [8, 128], strides = [1, 1]} : vector<8x384xf32> to vector<8x128xf32>
    %19 = arith.addf %17, %18 : vector<8x128xf32>
    %20 = arith.negf %19 : vector<8x128xf32>
    %21 = math.exp %20 : vector<8x128xf32>
    %cst_8 = arith.constant 1.000000e+00 : f32
    %22 = vector.broadcast %cst_8 : f32 to vector<8x128xf32>
    %23 = arith.addf %22, %21 : vector<8x128xf32>
    %24 = arith.divf %22, %23 : vector<8x128xf32>
    %25 = vector.extract_strided_slice %6 {offsets = [0, 256], sizes = [8, 128], strides = [1, 1]} : vector<8x384xf32> to vector<8x128xf32>
    %26 = vector.extract_strided_slice %8 {offsets = [0, 256], sizes = [8, 128], strides = [1, 1]} : vector<8x384xf32> to vector<8x128xf32>
    %c0_9 = arith.constant 0 : index
    %c0_10 = arith.constant 0 : index
    %27 = vector.load %arg5[%c0_9, %c0_10] : memref<1x128xf32, #tpu.memory_space<vmem>>, vector<1x128xf32>
    %28 = vector.broadcast %27 : vector<1x128xf32> to vector<8x128xf32>
    %29 = arith.addf %26, %28 : vector<8x128xf32>
    %30 = arith.mulf %16, %29 : vector<8x128xf32>
    %31 = arith.addf %25, %30 : vector<8x128xf32>
    %32 = math.tanh %31 : vector<8x128xf32>
    %33 = arith.subf %3, %32 : vector<8x128xf32>
    %34 = arith.mulf %24, %33 : vector<8x128xf32>
    %35 = arith.addf %32, %34 : vector<8x128xf32>
    %36 = arith.index_cast %c0_i32_2 : i32 to index
    %c0_11 = arith.constant 0 : index
    %c0_12 = arith.constant 0 : index
    %37 = vector.load %arg6[%36, %c0_11, %c0_12] : memref<4x8x128xf32, #tpu.memory_space<vmem>>, vector<1x8x128xf32>
    %38 = vector.shape_cast %37 : vector<1x8x128xf32> to vector<8x128xf32>
    %39 = vector.shape_cast %35 : vector<8x128xf32> to vector<1x8x128xf32>
    tpu.vector_store %arg6[%36, %c0_11, %c0_12], %39 {strides = array<i32>} : memref<4x8x128xf32, #tpu.memory_space<vmem>>, vector<1x8x128xf32>,
    %c1_i32 = arith.constant 1 : i32
    %40 = arith.index_cast %c1_i32 : i32 to index
    %c0_13 = arith.constant 0 : index
    %c0_14 = arith.constant 0 : index
    %41 = vector.load %arg2[%40, %c0_13, %c0_14] : memref<4x8x384xf32, #tpu.memory_space<vmem>>, vector<1x8x384xf32>
    %42 = vector.shape_cast %41 : vector<1x8x384xf32> to vector<8x384xf32>
    %c0_15 = arith.constant 0 : index
    %c0_16 = arith.constant 0 : index
    %43 = vector.load %arg4[%c0_15, %c0_16] : memref<128x384xf32, #tpu.memory_space<vmem>>, vector<128x384xf32>
    %cst_17 = arith.constant dense<0.000000e+00> : vector<8x384xf32>
    %44 = tpu.matmul %35, %43, %cst_17 {dimension_numbers = #tpu.dot_dimension_numbers<[1], [0], [0], [1], [0, 0, 1, 1], [], []>} : vector<8x128xf32>, vector<128x384xf32>, vector<8x384xf32> -> vector<8x384xf32>
    %45 = vector.extract_strided_slice %42 {offsets = [0, 0], sizes = [8, 128], strides = [1, 1]} : vector<8x384xf32> to vector<8x128xf32>
    %46 = vector.extract_strided_slice %44 {offsets = [0, 0], sizes = [8, 128], strides = [1, 1]} : vector<8x384xf32> to vector<8x128xf32>
    %47 = arith.addf %45, %46 : vector<8x128xf32>
    %48 = arith.negf %47 : vector<8x128xf32>
    %49 = math.exp %48 : vector<8x128xf32>
    %cst_18 = arith.constant 1.000000e+00 : f32
    %50 = vector.broadcast %cst_18 : f32 to vector<8x128xf32>
    %51 = arith.addf %50, %49 : vector<8x128xf32>
    %52 = arith.divf %50, %51 : vector<8x128xf32>
    %53 = vector.extract_strided_slice %42 {offsets = [0, 128], sizes = [8, 128], strides = [1, 1]} : vector<8x384xf32> to vector<8x128xf32>
    %54 = vector.extract_strided_slice %44 {offsets = [0, 128], sizes = [8, 128], strides = [1, 1]} : vector<8x384xf32> to vector<8x128xf32>
    %55 = arith.addf %53, %54 : vector<8x128xf32>
    %56 = arith.negf %55 : vector<8x128xf32>
    %57 = math.exp %56 : vector<8x128xf32>
    %cst_19 = arith.constant 1.000000e+00 : f32
    %58 = vector.broadcast %cst_19 : f32 to vector<8x128xf32>
    %59 = arith.addf %58, %57 : vector<8x128xf32>
    %60 = arith.divf %58, %59 : vector<8x128xf32>
    %61 = vector.extract_strided_slice %42 {offsets = [0, 256], sizes = [8, 128], strides = [1, 1]} : vector<8x384xf32> to vector<8x128xf32>
    %62 = vector.extract_strided_slice %44 {offsets = [0, 256], sizes = [8, 128], strides = [1, 1]} : vector<8x384xf32> to vector<8x128xf32>
    %c0_20 = arith.constant 0 : index
    %c0_21 = arith.constant 0 : index
    %63 = vector.load %arg5[%c0_20, %c0_21] : memref<1x128xf32, #tpu.memory_space<vmem>>, vector<1x128xf32>
    %64 = vector.broadcast %63 : vector<1x128xf32> to vector<8x128xf32>
    %65 = arith.addf %62, %64 : vector<8x128xf32>
    %66 = arith.mulf %52, %65 : vector<8x128xf32>
    %67 = arith.addf %61, %66 : vector<8x128xf32>
    %68 = math.tanh %67 : vector<8x128xf32>
    %69 = arith.subf %35, %68 : vector<8x128xf32>
    %70 = arith.mulf %60, %69 : vector<8x128xf32>
    %71 = arith.addf %68, %70 : vector<8x128xf32>
    %72 = arith.index_cast %c1_i32 : i32 to index
    %c0_22 = arith.constant 0 : index
    %c0_23 = arith.constant 0 : index
    %73 = vector.load %arg6[%72, %c0_22, %c0_23] : memref<4x8x128xf32, #tpu.memory_space<vmem>>, vector<1x8x128xf32>
    %74 = vector.shape_cast %73 : vector<1x8x128xf32> to vector<8x128xf32>
    %75 = vector.shape_cast %71 : vector<8x128xf32> to vector<1x8x128xf32>
    tpu.vector_store %arg6[%72, %c0_22, %c0_23], %75 {strides = array<i32>} : memref<4x8x128xf32, #tpu.memory_space<vmem>>, vector<1x8x128xf32>,
    %c2_i32 = arith.constant 2 : i32
    %76 = arith.index_cast %c2_i32 : i32 to index
    %c0_24 = arith.constant 0 : index
    %c0_25 = arith.constant 0 : index
    %77 = vector.load %arg2[%76, %c0_24, %c0_25] : memref<4x8x384xf32, #tpu.memory_space<vmem>>, vector<1x8x384xf32>
    %78 = vector.shape_cast %77 : vector<1x8x384xf32> to vector<8x384xf32>
    %c0_26 = arith.constant 0 : index
    %c0_27 = arith.constant 0 : index
    %79 = vector.load %arg4[%c0_26, %c0_27] : memref<128x384xf32, #tpu.memory_space<vmem>>, vector<128x384xf32>
    %cst_28 = arith.constant dense<0.000000e+00> : vector<8x384xf32>
    %80 = tpu.matmul %71, %79, %cst_28 {dimension_numbers = #tpu.dot_dimension_numbers<[1], [0], [0], [1], [0, 0, 1, 1], [], []>} : vector<8x128xf32>, vector<128x384xf32>, vector<8x384xf32> -> vector<8x384xf32>
    %81 = vector.extract_strided_slice %78 {offsets = [0, 0], sizes = [8, 128], strides = [1, 1]} : vector<8x384xf32> to vector<8x128xf32>
    %82 = vector.extract_strided_slice %80 {offsets = [0, 0], sizes = [8, 128], strides = [1, 1]} : vector<8x384xf32> to vector<8x128xf32>
    %83 = arith.addf %81, %82 : vector<8x128xf32>
    %84 = arith.negf %83 : vector<8x128xf32>
    %85 = math.exp %84 : vector<8x128xf32>
    %cst_29 = arith.constant 1.000000e+00 : f32
    %86 = vector.broadcast %cst_29 : f32 to vector<8x128xf32>
    %87 = arith.addf %86, %85 : vector<8x128xf32>
    %88 = arith.divf %86, %87 : vector<8x128xf32>
    %89 = vector.extract_strided_slice %78 {offsets = [0, 128], sizes = [8, 128], strides = [1, 1]} : vector<8x384xf32> to vector<8x128xf32>
    %90 = vector.extract_strided_slice %80 {offsets = [0, 128], sizes = [8, 128], strides = [1, 1]} : vector<8x384xf32> to vector<8x128xf32>
    %91 = arith.addf %89, %90 : vector<8x128xf32>
    %92 = arith.negf %91 : vector<8x128xf32>
    %93 = math.exp %92 : vector<8x128xf32>
    %cst_30 = arith.constant 1.000000e+00 : f32
    %94 = vector.broadcast %cst_30 : f32 to vector<8x128xf32>
    %95 = arith.addf %94, %93 : vector<8x128xf32>
    %96 = arith.divf %94, %95 : vector<8x128xf32>
    %97 = vector.extract_strided_slice %78 {offsets = [0, 256], sizes = [8, 128], strides = [1, 1]} : vector<8x384xf32> to vector<8x128xf32>
    %98 = vector.extract_strided_slice %80 {offsets = [0, 256], sizes = [8, 128], strides = [1, 1]} : vector<8x384xf32> to vector<8x128xf32>
    %c0_31 = arith.constant 0 : index
    %c0_32 = arith.constant 0 : index
    %99 = vector.load %arg5[%c0_31, %c0_32] : memref<1x128xf32, #tpu.memory_space<vmem>>, vector<1x128xf32>
    %100 = vector.broadcast %99 : vector<1x128xf32> to vector<8x128xf32>
    %101 = arith.addf %98, %100 : vector<8x128xf32>
    %102 = arith.mulf %88, %101 : vector<8x128xf32>
    %103 = arith.addf %97, %102 : vector<8x128xf32>
    %104 = math.tanh %103 : vector<8x128xf32>
    %105 = arith.subf %71, %104 : vector<8x128xf32>
    %106 = arith.mulf %96, %105 : vector<8x128xf32>
    %107 = arith.addf %104, %106 : vector<8x128xf32>
    %108 = arith.index_cast %c2_i32 : i32 to index
    %c0_33 = arith.constant 0 : index
    %c0_34 = arith.constant 0 : index
    %109 = vector.load %arg6[%108, %c0_33, %c0_34] : memref<4x8x128xf32, #tpu.memory_space<vmem>>, vector<1x8x128xf32>
    %110 = vector.shape_cast %109 : vector<1x8x128xf32> to vector<8x128xf32>
    %111 = vector.shape_cast %107 : vector<8x128xf32> to vector<1x8x128xf32>
    tpu.vector_store %arg6[%108, %c0_33, %c0_34], %111 {strides = array<i32>} : memref<4x8x128xf32, #tpu.memory_space<vmem>>, vector<1x8x128xf32>,
    %c3_i32 = arith.constant 3 : i32
    %112 = arith.index_cast %c3_i32 : i32 to index
    %c0_35 = arith.constant 0 : index
    %c0_36 = arith.constant 0 : index
    %113 = vector.load %arg2[%112, %c0_35, %c0_36] : memref<4x8x384xf32, #tpu.memory_space<vmem>>, vector<1x8x384xf32>
    %114 = vector.shape_cast %113 : vector<1x8x384xf32> to vector<8x384xf32>
    %c0_37 = arith.constant 0 : index
    %c0_38 = arith.constant 0 : index
    %115 = vector.load %arg4[%c0_37, %c0_38] : memref<128x384xf32, #tpu.memory_space<vmem>>, vector<128x384xf32>
    %cst_39 = arith.constant dense<0.000000e+00> : vector<8x384xf32>
    %116 = tpu.matmul %107, %115, %cst_39 {dimension_numbers = #tpu.dot_dimension_numbers<[1], [0], [0], [1], [0, 0, 1, 1], [], []>} : vector<8x128xf32>, vector<128x384xf32>, vector<8x384xf32> -> vector<8x384xf32>
    %117 = vector.extract_strided_slice %114 {offsets = [0, 0], sizes = [8, 128], strides = [1, 1]} : vector<8x384xf32> to vector<8x128xf32>
    %118 = vector.extract_strided_slice %116 {offsets = [0, 0], sizes = [8, 128], strides = [1, 1]} : vector<8x384xf32> to vector<8x128xf32>
    %119 = arith.addf %117, %118 : vector<8x128xf32>
    %120 = arith.negf %119 : vector<8x128xf32>
    %121 = math.exp %120 : vector<8x128xf32>
    %cst_40 = arith.constant 1.000000e+00 : f32
    %122 = vector.broadcast %cst_40 : f32 to vector<8x128xf32>
    %123 = arith.addf %122, %121 : vector<8x128xf32>
    %124 = arith.divf %122, %123 : vector<8x128xf32>
    %125 = vector.extract_strided_slice %114 {offsets = [0, 128], sizes = [8, 128], strides = [1, 1]} : vector<8x384xf32> to vector<8x128xf32>
    %126 = vector.extract_strided_slice %116 {offsets = [0, 128], sizes = [8, 128], strides = [1, 1]} : vector<8x384xf32> to vector<8x128xf32>
    %127 = arith.addf %125, %126 : vector<8x128xf32>
    %128 = arith.negf %127 : vector<8x128xf32>
    %129 = math.exp %128 : vector<8x128xf32>
    %cst_41 = arith.constant 1.000000e+00 : f32
    %130 = vector.broadcast %cst_41 : f32 to vector<8x128xf32>
    %131 = arith.addf %130, %129 : vector<8x128xf32>
    %132 = arith.divf %130, %131 : vector<8x128xf32>
    %133 = vector.extract_strided_slice %114 {offsets = [0, 256], sizes = [8, 128], strides = [1, 1]} : vector<8x384xf32> to vector<8x128xf32>
    %134 = vector.extract_strided_slice %116 {offsets = [0, 256], sizes = [8, 128], strides = [1, 1]} : vector<8x384xf32> to vector<8x128xf32>
    %c0_42 = arith.constant 0 : index
    %c0_43 = arith.constant 0 : index
    %135 = vector.load %arg5[%c0_42, %c0_43] : memref<1x128xf32, #tpu.memory_space<vmem>>, vector<1x128xf32>
    %136 = vector.broadcast %135 : vector<1x128xf32> to vector<8x128xf32>
    %137 = arith.addf %134, %136 : vector<8x128xf32>
    %138 = arith.mulf %124, %137 : vector<8x128xf32>
    %139 = arith.addf %133, %138 : vector<8x128xf32>
    %140 = math.tanh %139 : vector<8x128xf32>
    %141 = arith.subf %107, %140 : vector<8x128xf32>
    %142 = arith.mulf %132, %141 : vector<8x128xf32>
    %143 = arith.addf %140, %142 : vector<8x128xf32>
    %144 = arith.index_cast %c3_i32 : i32 to index
    %c0_44 = arith.constant 0 : index
    %c0_45 = arith.constant 0 : index
    %145 = vector.load %arg6[%144, %c0_44, %c0_45] : memref<4x8x128xf32, #tpu.memory_space<vmem>>, vector<1x8x128xf32>
    %146 = vector.shape_cast %145 : vector<1x8x128xf32> to vector<8x128xf32>
    %147 = vector.shape_cast %143 : vector<8x128xf32> to vector<1x8x128xf32>
    tpu.vector_store %arg6[%144, %c0_44, %c0_45], %147 {strides = array<i32>} : memref<4x8x128xf32, #tpu.memory_space<vmem>>, vector<1x8x128xf32>,
    %c4_i32 = arith.constant 4 : i32
    %c0_46 = arith.constant 0 : index
    %c0_47 = arith.constant 0 : index
    %148 = vector.load %arg7[%c0_46, %c0_47] : memref<8x128xf32, #tpu.memory_space<vmem>>, vector<8x128xf32>
    tpu.vector_store %arg7[%c0_46, %c0_47], %143 {strides = array<i32>} : memref<8x128xf32, #tpu.memory_space<vmem>>, vector<8x128xf32>,
    return
  }
  func.func @transform_0(%arg0: i32, %arg1: i32) -> (i32, i32, i32) {
    %c0_i32 = arith.constant 0 : i32
    %c0_i32_0 = arith.constant 0 : i32
    return %arg1, %arg0, %c0_i32 : i32, i32, i32
  }
  func.func @transform_1(%arg0: i32, %arg1: i32) -> (i32, i32) {
    %c0_i32 = arith.constant 0 : i32
    %c0_i32_0 = arith.constant 0 : i32
    return %arg0, %c0_i32 : i32, i32
  }
  func.func @transform_2(%arg0: i32, %arg1: i32) -> (i32, i32) {
    %c0_i32 = arith.constant 0 : i32
    %c0_i32_0 = arith.constant 0 : i32
    %c0_i32_1 = arith.constant 0 : i32
    return %c0_i32, %c0_i32_0 : i32, i32
  }
  func.func @transform_3(%arg0: i32, %arg1: i32) -> (i32, i32) {
    %c0_i32 = arith.constant 0 : i32
    %c0_i32_0 = arith.constant 0 : i32
    %c0_i32_1 = arith.constant 0 : i32
    return %c0_i32, %c0_i32_0 : i32, i32
  }
  func.func @transform_4(%arg0: i32, %arg1: i32) -> (i32, i32, i32) {
    %c0_i32 = arith.constant 0 : i32
    %c0_i32_0 = arith.constant 0 : i32
    return %arg1, %arg0, %c0_i32 : i32, i32, i32
  }
}

</mosaic_0001>

<llo_original>
// kernel: tpu_custom_call.1
$region0: #{tpu_custom_call.1}
  #allocation0 [shape = 'u32[]', space=smem, size = 0x4, offset = 0x4, fixed_abs, tag = 'smem constant byte address 0x4 - core index']
  #allocation1 [shape = 'u32[144,128]{1,0:T(1,128)}', space=vmem, size = 0x12000, scoped, tag = 'internal scratch']
  #allocation2 [shape = 'f32[8,128]{1,0:T(8,128)}', space=vmem, size = 0x1000, scoped, tag = 'scratch operand']
  %s0 = inlined_call_operand.hbm [shape: f32[8,8,384], index: 0, kind: input, shape index: {}]
  %s1 = inlined_call_operand.hbm [shape: f32[8,128], index: 1, kind: input, shape index: {}]
  %s2 = inlined_call_operand.hbm [shape: f32[128,384], index: 2, kind: input, shape index: {}]
  %s3 = inlined_call_operand.vmem [shape: f32[1,128], index: 3, kind: input, shape index: {}]
  %s4 = inlined_call_operand.hbm [shape: f32[8,8,128], index: 4, kind: output, shape index: {}]
  %s5 = sld [smem:[#allocation0]]
  $region65: #{tpu_custom_call.1} parent=0
    _
  %s7 = ssub.s32 1, %s5
  %s8 = scalar_select 0, %s7, %s5
  $region1: #{tpu_custom_call.1} parent=0
    #allocation3 [shape = 'u8[98304]{0}', space=vmem, size = 0x18000, scoped, tag = 'input window, operand 0']
    #allocation4 [shape = 's32[2]{0}', space=sflag, size = 0x8, scoped, tag = 'scoped memory for tpu_custom_call.1']
    #allocation5 [shape = 's32[2]{0}', space=sflag, size = 0x8, scoped, tag = 'scoped memory for tpu_custom_call.1']
    #allocation6 [shape = 'u8[4096]{0}', space=vmem, size = 0x1000, scoped, tag = 'input window, operand 1, single buffered']
    #allocation7 [shape = 's32[1]{0}', space=sflag, size = 0x4, scoped, tag = 'scoped memory for tpu_custom_call.1']
    #allocation8 [shape = 'u8[196608]{0}', space=vmem, size = 0x30000, scoped, tag = 'input window, operand 2, single buffered']
    #allocation9 [shape = 'u8[32768]{0}', space=vmem, size = 0x8000, scoped, tag = 'output window, operand 0']
    %9 = vsyncpa [#allocation4], 0
    %s10 = scalar_lea.sflag [#allocation4], 1
    %11 = vsyncpa %s10, 0
    %12 = vsyncpa [#allocation7], 0
    %13 = vsyncpa [#allocation5], 0
    %s14 = scalar_lea.sflag [#allocation5], 1
    %15 = vsyncpa %s14, 0
    loop: start=0, step=1, limit=4
    $region2: #{tpu_custom_call.1} parent=1 // loop_pre_header
      _
    $region3: #{tpu_custom_call.1} parent=1 // loop_header
      %s17 = sphi 0, %s21
      %p18 = scmp.ge.s32.totalorder %s17, 4
      %s24 = sphi 0, %s36
      %s25 = sphi 0, %s32
      %s26 = sphi 0, %s24
      %s27 = sphi 0, %s25
      %s28 = sphi 0, %s26
      %s29 = sphi 0, %s27
      %s41 = sphi 0, %s43
      %s44 = sphi 0, %s41
      %s45 = sphi 0, %s44
      %s61 = sphi 0, %s45
      %s67 = sphi 0, %s69
      %s70 = sphi 0, %s67
      %s71 = sphi 0, %s70
      %s87 = sphi 0, %s71
      %s91 = sphi 0, %s91
      %s93 = sphi 0, %s91
      %s94 = sphi 0, %s93
      %s108 = sphi 0, %s94
      %s112 = sphi 0, %s112
      %s114 = sphi 0, %s112
      %s115 = sphi 0, %s114
      %s129 = sphi 0, %s115
      %s137 = sphi 0, %s139
      %s140 = sphi 0, %s137
      %s141 = sphi 0, %s140
      %s157 = sphi 0, %s141
    $region4: #{tpu_custom_call.1} parent=1 // loop_header_branch
      %20 = sbr.rel (%p18) target = $region8
    $region5: #{tpu_custom_call.1} parent=1 // loop_body
      %s22 = ssub.s32 %s17, 1
      %s23 = ssub.s32 %s17, 2
      %s30 = sadd.s32 1, %s25
      %p31 = scmp.ge.s32.totalorder %s30, 2
      %s32 = scalar_select %p31, 0, %s30
      %s33 = sadd.s32 1, %s24
      %s34 = scalar_select %p31, %s33, %s24
      %p35 = scmp.ge.s32.totalorder %s34, 1
      %s36 = scalar_select %p35, 0, %s34
      %s37 = ssub.s32 %s25, %s32
      %s38 = ssub.s32 %s24, %s36
      %s39 = sor.u32 %s37, %s38
      %p40 = scmp.eq.s32.totalorder %s39, 0
      %s42 = sadd.s32 %s41, 1
      %s43 = scalar_select %p40, %s41, %s42
      %p46 = pneg %p40
      %p47 = scmp.eq.s32.totalorder %s17, 1
      %p48 = por %p46, %p47
      %p49 = scmp.ne.s32.totalorder %s41, %s44
      %p50 = scmp.eq.s32.totalorder %s17, 0
      %p51 = por %p49, %p50
      %p52 = scmp.ne.s32.totalorder %s41, %s44
      %p53 = scmp.eq.s32.totalorder %s22, 1
      %p54 = por %p52, %p53
      %p55 = scmp.ne.s32.totalorder %s44, %s45
      %p56 = scmp.eq.s32.totalorder %s22, 0
      %p57 = por %p55, %p56
      %p58 = scmp.ne.s32.totalorder %s44, %s45
      %p59 = scmp.eq.s32.totalorder %s23, 1
      %p60 = por %p58, %p59
      %p62 = scmp.ne.s32.totalorder %s45, %s61
      %p63 = scmp.eq.s32.totalorder %s23, 0
      %p64 = por %p62, %p63
      %s65 = ssub.s32 %s24, %s36
      %p66 = scmp.eq.s32.totalorder %s65, 0
      %s68 = sadd.s32 %s67, 1
      %s69 = scalar_select %p66, %s67, %s68
      %p72 = pneg %p66
      %p73 = scmp.eq.s32.totalorder %s17, 1
      %p74 = por %p72, %p73
      %p75 = scmp.ne.s32.totalorder %s67, %s70
      %p76 = scmp.eq.s32.totalorder %s17, 0
      %p77 = por %p75, %p76
      %p78 = scmp.ne.s32.totalorder %s67, %s70
      %p79 = scmp.eq.s32.totalorder %s22, 1
      %p80 = por %p78, %p79
      %p81 = scmp.ne.s32.totalorder %s70, %s71
      %p82 = scmp.eq.s32.totalorder %s22, 0
      %p83 = por %p81, %p82
      %p84 = scmp.ne.s32.totalorder %s70, %s71
      %p85 = scmp.eq.s32.totalorder %s23, 1
      %p86 = por %p84, %p85
      %p88 = scmp.ne.s32.totalorder %s71, %s87
      %p89 = scmp.eq.s32.totalorder %s23, 0
      %p90 = por %p88, %p89
      %s92 = sadd.s32 %s91, 1
      %p95 = scmp.eq.s32.totalorder %s17, 1
      %p96 = scmp.ne.s32.totalorder %s91, %s93
      %p97 = scmp.eq.s32.totalorder %s17, 0
      %p98 = por %p96, %p97
      %p99 = scmp.ne.s32.totalorder %s91, %s93
      %p100 = scmp.eq.s32.totalorder %s22, 1
      %p101 = por %p99, %p100
      %p102 = scmp.ne.s32.totalorder %s93, %s94
      %p103 = scmp.eq.s32.totalorder %s22, 0
      %p104 = por %p102, %p103
      %p105 = scmp.ne.s32.totalorder %s93, %s94
      %p106 = scmp.eq.s32.totalorder %s23, 1
      %p107 = por %p105, %p106
      %p109 = scmp.ne.s32.totalorder %s94, %s108
      %p110 = scmp.eq.s32.totalorder %s23, 0
      %p111 = por %p109, %p110
      %s113 = sadd.s32 %s112, 1
      %p116 = scmp.eq.s32.totalorder %s17, 1
      %p117 = scmp.ne.s32.totalorder %s112, %s114
      %p118 = scmp.eq.s32.totalorder %s17, 0
      %p119 = por %p117, %p118
      %p120 = scmp.ne.s32.totalorder %s112, %s114
      %p121 = scmp.eq.s32.totalorder %s22, 1
      %p122 = por %p120, %p121
      %p123 = scmp.ne.s32.totalorder %s114, %s115
      %p124 = scmp.eq.s32.totalorder %s22, 0
      %p125 = por %p123, %p124
      %p126 = scmp.ne.s32.totalorder %s114, %s115
      %p127 = scmp.eq.s32.totalorder %s23, 1
      %p128 = por %p126, %p127
      %p130 = scmp.ne.s32.totalorder %s115, %s129
      %p131 = scmp.eq.s32.totalorder %s23, 0
      %p132 = por %p130, %p131
      %s133 = ssub.s32 %s25, %s32
      %s134 = ssub.s32 %s24, %s36
      %s135 = sor.u32 %s133, %s134
      %p136 = scmp.eq.s32.totalorder %s135, 0
      %s138 = sadd.s32 %s137, 1
      %s139 = scalar_select %p136, %s137, %s138
      %p142 = pneg %p136
      %p143 = scmp.eq.s32.totalorder %s17, 1
      %p144 = por %p142, %p143
      %p145 = scmp.ne.s32.totalorder %s137, %s140
      %p146 = scmp.eq.s32.totalorder %s17, 0
      %p147 = por %p145, %p146
      %p148 = scmp.ne.s32.totalorder %s137, %s140
      %p149 = scmp.eq.s32.totalorder %s22, 1
      %p150 = por %p148, %p149
      %p151 = scmp.ne.s32.totalorder %s140, %s141
      %p152 = scmp.eq.s32.totalorder %s22, 0
      %p153 = por %p151, %p152
      %p154 = scmp.ne.s32.totalorder %s140, %s141
      %p155 = scmp.eq.s32.totalorder %s23, 1
      %p156 = por %p154, %p155
      %p158 = scmp.ne.s32.totalorder %s141, %s157
      %p159 = scmp.eq.s32.totalorder %s23, 0
      %p160 = por %p158, %p159
      %p161 = scmp.le.s32.totalorder 1, %s17
      %p162 = scmp.lt.s32.totalorder %s17, 3
      %p163 = pnand %p161, %p162
      %p164 = pneg %p163
      // Predicated region
      $region9: #{tpu_custom_call.1} parent=5 // pred_check
        _
      $region10: #{tpu_custom_call.1} parent=5 // pred_check_branch
        %166 = sbr.rel (%p163) target = $region12
      $region11: #{tpu_custom_call.1} parent=5 // pred_region
        %s167 = ssub.s32 %s17, 1
        // Predicated region
        $region13: #{tpu_custom_call.1} parent=11 // pred_check
          %p168 = pneg %p83
        $region14: #{tpu_custom_call.1} parent=11 // pred_check_branch
          %170 = sbr.rel (%p168) target = $region16
        $region15: #{tpu_custom_call.1} parent=11 // pred_region
          %s172 = ssub.s32 128, 128
          %173 = vsyncadd [#allocation7], %s172
          %s174 = smul.addr %s26, 128
          %s175 = scalar_lea.hbm %s1, %s174
          %s177 = sshll.u32 [#allocation6], 4
          %s178 = int_to_ptr.vmem [resolvable:$true] %s177
          %180 = dma.hbm_to_vmem [thread:$0]  %s175, 128, %s178, [#allocation7]
        $region16: #{tpu_custom_call.1} parent=11 // pred_fallthru
          _
        // Predicated region
        $region17: #{tpu_custom_call.1} parent=11 // pred_check
          %p181 = pneg %p104
        $region18: #{tpu_custom_call.1} parent=11 // pred_check_branch
          %183 = sbr.rel (%p181) target = $region20
        $region19: #{tpu_custom_call.1} parent=11 // pred_region
          %s185 = ssub.s32 6144, 6144
          %186 = vsyncadd [#allocation7], %s185
          %s187 = sshll.u32 [#allocation8], 4
          %s188 = int_to_ptr.vmem [resolvable:$true] %s187
          %193 = dma.hbm_to_vmem [thread:$0]  %s2, 6144, %s188, [#allocation7], 384, 384, 24
        $region20: #{tpu_custom_call.1} parent=11 // pred_fallthru
          _
        // Predicated region
        $region21: #{tpu_custom_call.1} parent=11 // pred_check
          %p194 = pneg %p125
        $region22: #{tpu_custom_call.1} parent=11 // pred_check_branch
          %196 = sbr.rel (%p194) target = $region24
        $region23: #{tpu_custom_call.1} parent=11 // pred_region
          _
        $region24: #{tpu_custom_call.1} parent=11 // pred_fallthru
          _
      $region12: #{tpu_custom_call.1} parent=5 // pred_fallthru
        _
      %p197 = scmp.lt.s32.totalorder %s17, 2
      // Predicated region
      $region25: #{tpu_custom_call.1} parent=5 // pred_check
        %p198 = pneg %p197
      $region26: #{tpu_custom_call.1} parent=5 // pred_check_branch
        %200 = sbr.rel (%p198) target = $region28
      $region27: #{tpu_custom_call.1} parent=5 // pred_region
        // Predicated region
        $region29: #{tpu_custom_call.1} parent=27 // pred_check
          %p201 = pneg %p51
        $region30: #{tpu_custom_call.1} parent=27 // pred_check_branch
          %203 = sbr.rel (%p201) target = $region32
        $region31: #{tpu_custom_call.1} parent=27 // pred_region
          %s204 = sand.u32 %s41, 1
          %s205 = scalar_lea.sflag [#allocation4], %s204
          %s206 = sand.u32 %s41, 1
          %s207 = smul.addr %s206, 96
          %s208 = scalar_lea.vmem [#allocation3], %s207
          %s209 = smul.u32 4, %s25
          %s211 = ssub.s32 1536, 1536
          %212 = vsyncadd %s205, %s211
          %s213 = smul.addr %s24, 3
          %s214 = smul.addr %s209, 3
          %s215 = sadd.s32 %s213, %s214
          %s216 = smul.addr %s215, 128
          %s217 = scalar_lea.hbm %s0, %s216
          %s218 = sshll.u32 %s208, 4
          %s219 = int_to_ptr.vmem [resolvable:$true] %s218
          %224 = dma.hbm_to_vmem [thread:$0]  %s217, 1536, %s219, %s205, 384, 384, 24
        $region32: #{tpu_custom_call.1} parent=27 // pred_fallthru
          _
      $region28: #{tpu_custom_call.1} parent=5 // pred_fallthru
        _
      %p225 = scmp.le.s32.totalorder 1, %s17
      %p226 = scmp.lt.s32.totalorder %s17, 3
      %p227 = pnand %p225, %p226
      %p228 = pneg %p227
      // Predicated region
      $region33: #{tpu_custom_call.1} parent=5 // pred_check
        _
      $region34: #{tpu_custom_call.1} parent=5 // pred_check_branch
        %230 = sbr.rel (%p227) target = $region36
      $region35: #{tpu_custom_call.1} parent=5 // pred_region
        %s231 = ssub.s32 %s17, 1
        %s232 = sand.u32 %s44, 1
        %s233 = scalar_lea.sflag [#allocation4], %s232
        %s234 = sand.u32 %s44, 1
        %s235 = smul.addr %s234, 96
        %s236 = scalar_lea.vmem [#allocation3], %s235
        // Predicated region
        $region37: #{tpu_custom_call.1} parent=35 // pred_check
          %p237 = pneg %p57
        $region38: #{tpu_custom_call.1} parent=35 // pred_check_branch
          %239 = sbr.rel (%p237) target = $region40
        $region39: #{tpu_custom_call.1} parent=35 // pred_region
          %240 = dma.done %s233, 1536
        $region40: #{tpu_custom_call.1} parent=35 // pred_fallthru
          _
        // Predicated region
        $region41: #{tpu_custom_call.1} parent=35 // pred_check
          %p241 = pneg %p83
        $region42: #{tpu_custom_call.1} parent=35 // pred_check_branch
          %243 = sbr.rel (%p241) target = $region44
        $region43: #{tpu_custom_call.1} parent=35 // pred_region
          %244 = dma.done [#allocation7], 128
        $region44: #{tpu_custom_call.1} parent=35 // pred_fallthru
          _
        // Predicated region
        $region45: #{tpu_custom_call.1} parent=35 // pred_check
          %p245 = pneg %p104
        $region46: #{tpu_custom_call.1} parent=35 // pred_check_branch
          %247 = sbr.rel (%p245) target = $region48
        $region47: #{tpu_custom_call.1} parent=35 // pred_region
          %248 = dma.done [#allocation7], 6144
        $region48: #{tpu_custom_call.1} parent=35 // pred_fallthru
          _
        %s249 = sand.u32 %s44, 1
        %s250 = scalar_lea.sflag [#allocation4], %s249
        %s251 = sand.u32 %s44, 1
        %s252 = smul.addr %s251, 96
        %s253 = scalar_lea.vmem [#allocation3], %s252
        %p254 = pneg %p57
        %p255 = pneg %p54
        %p256 = pneg %p83
        %p257 = pneg %p80
        %p258 = pneg %p104
        %p259 = pneg %p101
        %p260 = pneg %p125
        %p261 = pneg %p122
        %p262 = pneg %p153
        %p263 = pneg %p150
        %s264 = sand.u32 %s140, 1
        %s265 = scalar_lea.sflag [#allocation5], %s264
        %s266 = sand.u32 %s140, 1
        %s267 = smul.addr %s266, 32
        %s268 = scalar_lea.vmem [#allocation9], %s267
        %s269 = smul.u32 4, %s27
        %s270 = smul.u32 4, %s27
        %p271 = scmp.eq.s32.totalorder %s27, 0
        // Predicated region
        $region49: #{tpu_custom_call.1} parent=35 // pred_check
          %p272 = pneg %p271
        $region50: #{tpu_custom_call.1} parent=35 // pred_check_branch
          %274 = sbr.rel (%p272) target = $region52
        $region51: #{tpu_custom_call.1} parent=35 // pred_region
          %v275 = vld [vmem:[#allocation6] sm:$0xff]
          %276 = vst [vmem:[#allocation2] sm:$0xff] %v275
        $region52: #{tpu_custom_call.1} parent=35 // pred_fallthru
          _
        %v277 = vld [vmem:[#allocation2] sm:$0xff]
        %v278 = vld [vmem:[%s236] sm:$0xff]
        %v279 = vld [vmem:[%s236 + $0x8] sm:$0xff]
        %v280 = vld [vmem:[%s236 + $0x10] sm:$0xff]
        %v281 = vld [vmem:[#allocation8] sm:$0xff]
        %v282 = vld [vmem:[#allocation8 + $0x8] sm:$0xff]
        %v283 = vld [vmem:[#allocation8 + $0x10] sm:$0xff]
        %v284 = vld [vmem:[#allocation8 + $0x18] sm:$0xff]
        %v285 = vld [vmem:[#allocation8 + $0x20] sm:$0xff]
        %v286 = vld [vmem:[#allocation8 + $0x28] sm:$0xff]
        %v287 = vld [vmem:[#allocation8 + $0x30] sm:$0xff]
        %v288 = vld [vmem:[#allocation8 + $0x38] sm:$0xff]
        %v289 = vld [vmem:[#allocation8 + $0x40] sm:$0xff]
        %v290 = vld [vmem:[#allocation8 + $0x48] sm:$0xff]
        %v291 = vld [vmem:[#allocation8 + $0x50] sm:$0xff]
        %v292 = vld [vmem:[#allocation8 + $0x58] sm:$0xff]
        %v293 = vld [vmem:[#allocation8 + $0x60] sm:$0xff]
        %v294 = vld [vmem:[#allocation8 + $0x68] sm:$0xff]
        %v295 = vld [vmem:[#allocation8 + $0x70] sm:$0xff]
        %v296 = vld [vmem:[#allocation8 + $0x78] sm:$0xff]
        %v297 = vld [vmem:[#allocation8 + $0x80] sm:$0xff]
        %v298 = vld [vmem:[#allocation8 + $0x88] sm:$0xff]
        %v299 = vld [vmem:[#allocation8 + $0x90] sm:$0xff]
        %v300 = vld [vmem:[#allocation8 + $0x98] sm:$0xff]
        %v301 = vld [vmem:[#allocation8 + $0xa0] sm:$0xff]
        %v302 = vld [vmem:[#allocation8 + $0xa8] sm:$0xff]
        %v303 = vld [vmem:[#allocation8 + $0xb0] sm:$0xff]
        %v304 = vld [vmem:[#allocation8 + $0xb8] sm:$0xff]
        %v305 = vld [vmem:[#allocation8 + $0xc0] sm:$0xff]
        %v306 = vld [vmem:[#allocation8 + $0xc8] sm:$0xff]
        %v307 = vld [vmem:[#allocation8 + $0xd0] sm:$0xff]
        %v308 = vld [vmem:[#allocation8 + $0xd8] sm:$0xff]
        %v309 = vld [vmem:[#allocation8 + $0xe0] sm:$0xff]
        %v310 = vld [vmem:[#allocation8 + $0xe8] sm:$0xff]
        %v311 = vld [vmem:[#allocation8 + $0xf0] sm:$0xff]
        %v312 = vld [vmem:[#allocation8 + $0xf8] sm:$0xff]
        %v313 = vld [vmem:[#allocation8 + $0x100] sm:$0xff]
        %v314 = vld [vmem:[#allocation8 + $0x108] sm:$0xff]
        %v315 = vld [vmem:[#allocation8 + $0x110] sm:$0xff]
        %v316 = vld [vmem:[#allocation8 + $0x118] sm:$0xff]
        %v317 = vld [vmem:[#allocation8 + $0x120] sm:$0xff]
        %v318 = vld [vmem:[#allocation8 + $0x128] sm:$0xff]
        %v319 = vld [vmem:[#allocation8 + $0x130] sm:$0xff]
        %v320 = vld [vmem:[#allocation8 + $0x138] sm:$0xff]
        %v321 = vld [vmem:[#allocation8 + $0x140] sm:$0xff]
        %v322 = vld [vmem:[#allocation8 + $0x148] sm:$0xff]
        %v323 = vld [vmem:[#allocation8 + $0x150] sm:$0xff]
        %v324 = vld [vmem:[#allocation8 + $0x158] sm:$0xff]
        %v325 = vld [vmem:[#allocation8 + $0x160] sm:$0xff]
        %v326 = vld [vmem:[#allocation8 + $0x168] sm:$0xff]
        %v327 = vld [vmem:[#allocation8 + $0x170] sm:$0xff]
        %v328 = vld [vmem:[#allocation8 + $0x178] sm:$0xff]
        %329 = vmatprep.subr.mxu0 %v282
        %330 = vmatpush1.msra.mxu0 %v281
        %331 = vmatprep.subr.mxu0 %v285
        %332 = vmatpush1.msra.mxu0 %v284
        %333 = vmatprep.subr.mxu0 %v288
        %334 = vmatpush1.msra.mxu0 %v287
        %335 = vmatprep.subr.mxu0 %v291
        %336 = vmatpush1.msra.mxu0 %v290
        %337 = vmatprep.subr.mxu0 %v294
        %338 = vmatpush1.msra.mxu0 %v293
        %339 = vmatprep.subr.mxu0 %v297
        %340 = vmatpush1.msra.mxu0 %v296
        %341 = vmatprep.subr.mxu0 %v300
        %342 = vmatpush1.msra.mxu0 %v299
        %343 = vmatprep.subr.mxu0 %v303
        %344 = vmatpush1.msra.mxu0 %v302
        %345 = vmatprep.subr.mxu0 %v306
        %346 = vmatpush1.msra.mxu0 %v305
        %347 = vmatprep.subr.mxu0 %v309
        %348 = vmatpush1.msra.mxu0 %v308
        %349 = vmatprep.subr.mxu0 %v312
        %350 = vmatpush1.msra.mxu0 %v311
        %351 = vmatprep.subr.mxu0 %v315
        %352 = vmatpush1.msra.mxu0 %v314
        %353 = vmatprep.subr.mxu0 %v318
        %354 = vmatpush1.msra.mxu0 %v317
        %355 = vmatprep.subr.mxu0 %v321
        %356 = vmatpush1.msra.mxu0 %v320
        %357 = vmatprep.subr.mxu0 %v324
        %358 = vmatpush1.msra.mxu0 %v323
        %359 = vmatprep.subr.mxu0 %v327
        %360 = vmatpush1.msra.mxu0 %v326
        %361 = vmatprep.subr.mxu0 0.0
        %362 = vmatpush1.msra.mxu0 0.0
        %363 = vmatprep.subr.mxu0 0.0
        %364 = vmatpush1.msra.mxu0 0.0
        %365 = vmatprep.subr.mxu0 0.0
        %366 = vmatpush1.msra.mxu0 0.0
        %367 = vmatprep.subr.mxu0 0.0
        %368 = vmatpush1.msra.mxu0 0.0
        %369 = vmatprep.subr.mxu0 0.0
        %370 = vmatpush1.msra.mxu0 0.0
        %371 = vmatprep.subr.mxu0 0.0
        %372 = vmatpush1.msra.mxu0 0.0
        %373 = vmatprep.subr.mxu0 0.0
        %374 = vmatpush1.msra.mxu0 0.0
        %375 = vmatprep.subr.mxu0 0.0
        %376 = vmatpush1.msra.mxu0 0.0
        %377 = vmatprep.subr.mxu0 0.0
        %378 = vmatpush1.msra.mxu0 0.0
        %379 = vmatprep.subr.mxu0 0.0
        %380 = vmatpush1.msra.mxu0 0.0
        %381 = vmatprep.subr.mxu0 0.0
        %382 = vmatpush1.msra.mxu0 0.0
        %383 = vmatprep.subr.mxu0 0.0
        %384 = vmatpush1.msra.mxu0 0.0
        %385 = vmatprep.subr.mxu0 0.0
        %386 = vmatpush1.msra.mxu0 0.0
        %387 = vmatprep.subr.mxu0 0.0
        %388 = vmatpush1.msra.mxu0 0.0
        %389 = vmatprep.subr.mxu0 0.0
        %390 = vmatpush1.msra.mxu0 0.0
        %391 = vmatprep.subr.mxu0 0.0
        %392 = vmatpush1.msra.mxu0 0.0
        %393 = vmatprep.mubr.f32.mxu0 0.0
        %394 = vmatmul.mubr.f32.gmra.mrb[0].mxu0 %v277
        %v395 = vpop.f32.mrb[0].mxu0
        %v396 = vadd.f32 0.0, %v395
        %v397 = vpop.f32.mrb[0].mxu0
        %v398 = vadd.f32 0.0, %v397
        %399 = vdwg.mxu0
        %400 = vmatprep.subr.mxu0 0.0
        %401 = vmatpush1.msra.mxu0 %v283
        %402 = vmatprep.subr.mxu0 0.0
        %403 = vmatpush1.msra.mxu0 %v286
        %404 = vmatprep.subr.mxu0 0.0
        %405 = vmatpush1.msra.mxu0 %v289
        %406 = vmatprep.subr.mxu0 0.0
        %407 = vmatpush1.msra.mxu0 %v292
        %408 = vmatprep.subr.mxu0 0.0
        %409 = vmatpush1.msra.mxu0 %v295
        %410 = vmatprep.subr.mxu0 0.0
        %411 = vmatpush1.msra.mxu0 %v298
        %412 = vmatprep.subr.mxu0 0.0
        %413 = vmatpush1.msra.mxu0 %v301
        %414 = vmatprep.subr.mxu0 0.0
        %415 = vmatpush1.msra.mxu0 %v304
        %416 = vmatprep.subr.mxu0 0.0
        %417 = vmatpush1.msra.mxu0 %v307
        %418 = vmatprep.subr.mxu0 0.0
        %419 = vmatpush1.msra.mxu0 %v310
        %420 = vmatprep.subr.mxu0 0.0
        %421 = vmatpush1.msra.mxu0 %v313
        %422 = vmatprep.subr.mxu0 0.0
        %423 = vmatpush1.msra.mxu0 %v316
        %424 = vmatprep.subr.mxu0 0.0
        %425 = vmatpush1.msra.mxu0 %v319
        %426 = vmatprep.subr.mxu0 0.0
        %427 = vmatpush1.msra.mxu0 %v322
        %428 = vmatprep.subr.mxu0 0.0
        %429 = vmatpush1.msra.mxu0 %v325
        %430 = vmatprep.subr.mxu0 0.0
        %431 = vmatpush1.msra.mxu0 %v328
        %432 = vmatprep.subr.mxu0 0.0
        %433 = vmatpush1.msra.mxu0 0.0
        %434 = vmatprep.subr.mxu0 0.0
        %435 = vmatpush1.msra.mxu0 0.0
        %436 = vmatprep.subr.mxu0 0.0
        %437 = vmatpush1.msra.mxu0 0.0
        %438 = vmatprep.subr.mxu0 0.0
        %439 = vmatpush1.msra.mxu0 0.0
        %440 = vmatprep.subr.mxu0 0.0
        %441 = vmatpush1.msra.mxu0 0.0
        %442 = vmatprep.subr.mxu0 0.0
        %443 = vmatpush1.msra.mxu0 0.0
        %444 = vmatprep.subr.mxu0 0.0
        %445 = vmatpush1.msra.mxu0 0.0
        %446 = vmatprep.subr.mxu0 0.0
        %447 = vmatpush1.msra.mxu0 0.0
        %448 = vmatprep.subr.mxu0 0.0
        %449 = vmatpush1.msra.mxu0 0.0
        %450 = vmatprep.subr.mxu0 0.0
        %451 = vmatpush1.msra.mxu0 0.0
        %452 = vmatprep.subr.mxu0 0.0
        %453 = vmatpush1.msra.mxu0 0.0
        %454 = vmatprep.subr.mxu0 0.0
        %455 = vmatpush1.msra.mxu0 0.0
        %456 = vmatprep.subr.mxu0 0.0
        %457 = vmatpush1.msra.mxu0 0.0
        %458 = vmatprep.subr.mxu0 0.0
        %459 = vmatpush1.msra.mxu0 0.0
        %460 = vmatprep.subr.mxu0 0.0
        %461 = vmatpush1.msra.mxu0 0.0
        %462 = vmatprep.subr.mxu0 0.0
        %463 = vmatpush1.msra.mxu0 0.0
        %464 = vmatprep.mubr.f32.mxu0 0.0
        %465 = vmatmul.mubr.f32.gmra.mrb[0].mxu0 %v277
        %v466 = vpop.f32.mrb[0].mxu0
        %v467 = vadd.f32 0.0, %v466
        %v468 = vpop.f32.mrb[0].mxu0
        %469 = vdwg.mxu0
        %v470 = vadd.f32 %v278, %v396
        %v471 = vxor.u32 %v470, 2147483648
        %v472 = vmul.f32 %v471, 1.442695
        %v473 = vpow.pop %v472
        %v474 = vadd.f32 %v473, 1.0
        %v475 = vrcp.pop %v474
        %v476 = vmul.f32 1.0, %v475
        %v477 = vadd.f32 %v279, %v398
        %v478 = vxor.u32 %v477, 2147483648
        %v479 = vmul.f32 %v478, 1.442695
        %v480 = vpow.pop %v479
        %v481 = vadd.f32 %v480, 1.0
        %v482 = vrcp.pop %v481
        %v483 = vmul.f32 1.0, %v482
        %v484 = vld [vmem:[%s3] sm:$0x1]
        %v486 = vlaneseq
        %v487 = vshrl.u32 %v486, 7
        %v488 = vsub.s32 0, %v487
        %v489 = vrot.slane %v484, %v488
        %v491 = vadd.f32 %v467, %v489
        %v492 = vmul.f32 %v476, %v491
        %v493 = vadd.f32 %v280, %v492
        %v494 = vtanh.pop %v493
        %v495 = vsub.f32 %v277, %v494
        %v496 = vmul.f32 %v483, %v495
        %v497 = vadd.f32 %v494, %v496
        %498 = vst [vmem:[%s268] sm:$0xff] %v497
        %s499 = scalar_lea.vmem %s236, 24 [#allocation3]
        %v500 = vld [vmem:[%s499] sm:$0xff]
        %v501 = vld [vmem:[%s499 + $0x8] sm:$0xff]
        %v502 = vld [vmem:[%s499 + $0x10] sm:$0xff]
        %v503 = vld [vmem:[#allocation8] sm:$0xff]
        %v504 = vld [vmem:[#allocation8 + $0x8] sm:$0xff]
        %v505 = vld [vmem:[#allocation8 + $0x10] sm:$0xff]
        %v506 = vld [vmem:[#allocation8 + $0x18] sm:$0xff]
        %v507 = vld [vmem:[#allocation8 + $0x20] sm:$0xff]
        %v508 = vld [vmem:[#allocation8 + $0x28] sm:$0xff]
        %v509 = vld [vmem:[#allocation8 + $0x30] sm:$0xff]
        %v510 = vld [vmem:[#allocation8 + $0x38] sm:$0xff]
        %v511 = vld [vmem:[#allocation8 + $0x40] sm:$0xff]
        %v512 = vld [vmem:[#allocation8 + $0x48] sm:$0xff]
        %v513 = vld [vmem:[#allocation8 + $0x50] sm:$0xff]
        %v514 = vld [vmem:[#allocation8 + $0x58] sm:$0xff]
        %v515 = vld [vmem:[#allocation8 + $0x60] sm:$0xff]
        %v516 = vld [vmem:[#allocation8 + $0x68] sm:$0xff]
        %v517 = vld [vmem:[#allocation8 + $0x70] sm:$0xff]
        %v518 = vld [vmem:[#allocation8 + $0x78] sm:$0xff]
        %v519 = vld [vmem:[#allocation8 + $0x80] sm:$0xff]
        %v520 = vld [vmem:[#allocation8 + $0x88] sm:$0xff]
        %v521 = vld [vmem:[#allocation8 + $0x90] sm:$0xff]
        %v522 = vld [vmem:[#allocation8 + $0x98] sm:$0xff]
        %v523 = vld [vmem:[#allocation8 + $0xa0] sm:$0xff]
        %v524 = vld [vmem:[#allocation8 + $0xa8] sm:$0xff]
        %v525 = vld [vmem:[#allocation8 + $0xb0] sm:$0xff]
        %v526 = vld [vmem:[#allocation8 + $0xb8] sm:$0xff]
        %v527 = vld [vmem:[#allocation8 + $0xc0] sm:$0xff]
        %v528 = vld [vmem:[#allocation8 + $0xc8] sm:$0xff]
        %v529 = vld [vmem:[#allocation8 + $0xd0] sm:$0xff]
        %v530 = vld [vmem:[#allocation8 + $0xd8] sm:$0xff]
        %v531 = vld [vmem:[#allocation8 + $0xe0] sm:$0xff]
        %v532 = vld [vmem:[#allocation8 + $0xe8] sm:$0xff]
        %v533 = vld [vmem:[#allocation8 + $0xf0] sm:$0xff]
        %v534 = vld [vmem:[#allocation8 + $0xf8] sm:$0xff]
        %v535 = vld [vmem:[#allocation8 + $0x100] sm:$0xff]
        %v536 = vld [vmem:[#allocation8 + $0x108] sm:$0xff]
        %v537 = vld [vmem:[#allocation8 + $0x110] sm:$0xff]
        %v538 = vld [vmem:[#allocation8 + $0x118] sm:$0xff]
        %v539 = vld [vmem:[#allocation8 + $0x120] sm:$0xff]
        %v540 = vld [vmem:[#allocation8 + $0x128] sm:$0xff]
        %v541 = vld [vmem:[#allocation8 + $0x130] sm:$0xff]
        %v542 = vld [vmem:[#allocation8 + $0x138] sm:$0xff]
        %v543 = vld [vmem:[#allocation8 + $0x140] sm:$0xff]
        %v544 = vld [vmem:[#allocation8 + $0x148] sm:$0xff]
        %v545 = vld [vmem:[#allocation8 + $0x150] sm:$0xff]
        %v546 = vld [vmem:[#allocation8 + $0x158] sm:$0xff]
        %v547 = vld [vmem:[#allocation8 + $0x160] sm:$0xff]
        %v548 = vld [vmem:[#allocation8 + $0x168] sm:$0xff]
        %v549 = vld [vmem:[#allocation8 + $0x170] sm:$0xff]
        %v550 = vld [vmem:[#allocation8 + $0x178] sm:$0xff]
        %551 = vmatprep.subr.mxu0 %v504
        %552 = vmatpush1.msra.mxu0 %v503
        %553 = vmatprep.subr.mxu0 %v507
        %554 = vmatpush1.msra.mxu0 %v506
        %555 = vmatprep.subr.mxu0 %v510
        %556 = vmatpush1.msra.mxu0 %v509
        %557 = vmatprep.subr.mxu0 %v513
        %558 = vmatpush1.msra.mxu0 %v512
        %559 = vmatprep.subr.mxu0 %v516
        %560 = vmatpush1.msra.mxu0 %v515
        %561 = vmatprep.subr.mxu0 %v519
        %562 = vmatpush1.msra.mxu0 %v518
        %563 = vmatprep.subr.mxu0 %v522
        %564 = vmatpush1.msra.mxu0 %v521
        %565 = vmatprep.subr.mxu0 %v525
        %566 = vmatpush1.msra.mxu0 %v524
        %567 = vmatprep.subr.mxu0 %v528
        %568 = vmatpush1.msra.mxu0 %v527
        %569 = vmatprep.subr.mxu0 %v531
        %570 = vmatpush1.msra.mxu0 %v530
        %571 = vmatprep.subr.mxu0 %v534
        %572 = vmatpush1.msra.mxu0 %v533
        %573 = vmatprep.subr.mxu0 %v537
        %574 = vmatpush1.msra.mxu0 %v536
        %575 = vmatprep.subr.mxu0 %v540
        %576 = vmatpush1.msra.mxu0 %v539
        %577 = vmatprep.subr.mxu0 %v543
        %578 = vmatpush1.msra.mxu0 %v542
        %579 = vmatprep.subr.mxu0 %v546
        %580 = vmatpush1.msra.mxu0 %v545
        %581 = vmatprep.subr.mxu0 %v549
        %582 = vmatpush1.msra.mxu0 %v548
        %583 = vmatprep.subr.mxu0 0.0
        %584 = vmatpush1.msra.mxu0 0.0
        %585 = vmatprep.subr.mxu0 0.0
        %586 = vmatpush1.msra.mxu0 0.0
        %587 = vmatprep.subr.mxu0 0.0
        %588 = vmatpush1.msra.mxu0 0.0
        %589 = vmatprep.subr.mxu0 0.0
        %590 = vmatpush1.msra.mxu0 0.0
        %591 = vmatprep.subr.mxu0 0.0
        %592 = vmatpush1.msra.mxu0 0.0
        %593 = vmatprep.subr.mxu0 0.0
        %594 = vmatpush1.msra.mxu0 0.0
        %595 = vmatprep.subr.mxu0 0.0
        %596 = vmatpush1.msra.mxu0 0.0
        %597 = vmatprep.subr.mxu0 0.0
        %598 = vmatpush1.msra.mxu0 0.0
        %599 = vmatprep.subr.mxu0 0.0
        %600 = vmatpush1.msra.mxu0 0.0
        %601 = vmatprep.subr.mxu0 0.0
        %602 = vmatpush1.msra.mxu0 0.0
        %603 = vmatprep.subr.mxu0 0.0
        %604 = vmatpush1.msra.mxu0 0.0
        %605 = vmatprep.subr.mxu0 0.0
        %606 = vmatpush1.msra.mxu0 0.0
        %607 = vmatprep.subr.mxu0 0.0
        %608 = vmatpush1.msra.mxu0 0.0
        %609 = vmatprep.subr.mxu0 0.0
        %610 = vmatpush1.msra.mxu0 0.0
        %611 = vmatprep.subr.mxu0 0.0
        %612 = vmatpush1.msra.mxu0 0.0
        %613 = vmatprep.subr.mxu0 0.0
        %614 = vmatpush1.msra.mxu0 0.0
        %615 = vmatprep.mubr.f32.mxu0 0.0
        %616 = vmatmul.mubr.f32.gmra.mrb[0].mxu0 %v497
        %v617 = vpop.f32.mrb[0].mxu0
        %v618 = vadd.f32 0.0, %v617
        %v619 = vpop.f32.mrb[0].mxu0
        %v620 = vadd.f32 0.0, %v619
        %621 = vdwg.mxu0
        %622 = vmatprep.subr.mxu0 0.0
        %623 = vmatpush1.msra.mxu0 %v505
        %624 = vmatprep.subr.mxu0 0.0
        %625 = vmatpush1.msra.mxu0 %v508
        %626 = vmatprep.subr.mxu0 0.0
        %627 = vmatpush1.msra.mxu0 %v511
        %628 = vmatprep.subr.mxu0 0.0
        %629 = vmatpush1.msra.mxu0 %v514
        %630 = vmatprep.subr.mxu0 0.0
        %631 = vmatpush1.msra.mxu0 %v517
        %632 = vmatprep.subr.mxu0 0.0
        %633 = vmatpush1.msra.mxu0 %v520
        %634 = vmatprep.subr.mxu0 0.0
        %635 = vmatpush1.msra.mxu0 %v523
        %636 = vmatprep.subr.mxu0 0.0
        %637 = vmatpush1.msra.mxu0 %v526
        %638 = vmatprep.subr.mxu0 0.0
        %639 = vmatpush1.msra.mxu0 %v529
        %640 = vmatprep.subr.mxu0 0.0
        %641 = vmatpush1.msra.mxu0 %v532
        %642 = vmatprep.subr.mxu0 0.0
        %643 = vmatpush1.msra.mxu0 %v535
        %644 = vmatprep.subr.mxu0 0.0
        %645 = vmatpush1.msra.mxu0 %v538
        %646 = vmatprep.subr.mxu0 0.0
        %647 = vmatpush1.msra.mxu0 %v541
        %648 = vmatprep.subr.mxu0 0.0
        %649 = vmatpush1.msra.mxu0 %v544
        %650 = vmatprep.subr.mxu0 0.0
        %651 = vmatpush1.msra.mxu0 %v547
        %652 = vmatprep.subr.mxu0 0.0
        %653 = vmatpush1.msra.mxu0 %v550
        %654 = vmatprep.subr.mxu0 0.0
        %655 = vmatpush1.msra.mxu0 0.0
        %656 = vmatprep.subr.mxu0 0.0
        %657 = vmatpush1.msra.mxu0 0.0
        %658 = vmatprep.subr.mxu0 0.0
        %659 = vmatpush1.msra.mxu0 0.0
        %660 = vmatprep.subr.mxu0 0.0
        %661 = vmatpush1.msra.mxu0 0.0
        %662 = vmatprep.subr.mxu0 0.0
        %663 = vmatpush1.msra.mxu0 0.0
        %664 = vmatprep.subr.mxu0 0.0
        %665 = vmatpush1.msra.mxu0 0.0
        %666 = vmatprep.subr.mxu0 0.0
        %667 = vmatpush1.msra.mxu0 0.0
        %668 = vmatprep.subr.mxu0 0.0
        %669 = vmatpush1.msra.mxu0 0.0
        %670 = vmatprep.subr.mxu0 0.0
        %671 = vmatpush1.msra.mxu0 0.0
        %672 = vmatprep.subr.mxu0 0.0
        %673 = vmatpush1.msra.mxu0 0.0
        %674 = vmatprep.subr.mxu0 0.0
        %675 = vmatpush1.msra.mxu0 0.0
        %676 = vmatprep.subr.mxu0 0.0
        %677 = vmatpush1.msra.mxu0 0.0
        %678 = vmatprep.subr.mxu0 0.0
        %679 = vmatpush1.msra.mxu0 0.0
        %680 = vmatprep.subr.mxu0 0.0
        %681 = vmatpush1.msra.mxu0 0.0
        %682 = vmatprep.subr.mxu0 0.0
        %683 = vmatpush1.msra.mxu0 0.0
        %684 = vmatprep.subr.mxu0 0.0
        %685 = vmatpush1.msra.mxu0 0.0
        %686 = vmatprep.mubr.f32.mxu0 0.0
        %687 = vmatmul.mubr.f32.gmra.mrb[0].mxu0 %v497
        %v688 = vpop.f32.mrb[0].mxu0
        %v689 = vadd.f32 0.0, %v688
        %v690 = vpop.f32.mrb[0].mxu0
        %691 = vdwg.mxu0
        %v692 = vadd.f32 %v500, %v618
        %v693 = vxor.u32 %v692, 2147483648
        %v694 = vmul.f32 %v693, 1.442695
        %v695 = vpow.pop %v694
        %v696 = vadd.f32 %v695, 1.0
        %v697 = vrcp.pop %v696
        %v698 = vmul.f32 1.0, %v697
        %v699 = vadd.f32 %v501, %v620
        %v700 = vxor.u32 %v699, 2147483648
        %v701 = vmul.f32 %v700, 1.442695
        %v702 = vpow.pop %v701
        %v703 = vadd.f32 %v702, 1.0
        %v704 = vrcp.pop %v703
        %v705 = vmul.f32 1.0, %v704
        %v706 = vld [vmem:[%s3] sm:$0x1]
        %v708 = vlaneseq
        %v709 = vshrl.u32 %v708, 7
        %v710 = vsub.s32 0, %v709
        %v711 = vrot.slane %v706, %v710
        %v713 = vadd.f32 %v689, %v711
        %v714 = vmul.f32 %v698, %v713
        %v715 = vadd.f32 %v502, %v714
        %v716 = vtanh.pop %v715
        %v717 = vsub.f32 %v497, %v716
        %v718 = vmul.f32 %v705, %v717
        %v719 = vadd.f32 %v716, %v718
        %s720 = scalar_lea.vmem %s268, 8 [#allocation9]
        %721 = vst [vmem:[%s720] sm:$0xff] %v719
        %s722 = scalar_lea.vmem %s236, 48 [#allocation3]
        %v723 = vld [vmem:[%s722] sm:$0xff]
        %v724 = vld [vmem:[%s722 + $0x8] sm:$0xff]
        %v725 = vld [vmem:[%s722 + $0x10] sm:$0xff]
        %v726 = vld [vmem:[#allocation8] sm:$0xff]
        %v727 = vld [vmem:[#allocation8 + $0x8] sm:$0xff]
        %v728 = vld [vmem:[#allocation8 + $0x10] sm:$0xff]
        %v729 = vld [vmem:[#allocation8 + $0x18] sm:$0xff]
        %v730 = vld [vmem:[#allocation8 + $0x20] sm:$0xff]
        %v731 = vld [vmem:[#allocation8 + $0x28] sm:$0xff]
        %v732 = vld [vmem:[#allocation8 + $0x30] sm:$0xff]
        %v733 = vld [vmem:[#allocation8 + $0x38] sm:$0xff]
        %v734 = vld [vmem:[#allocation8 + $0x40] sm:$0xff]
        %v735 = vld [vmem:[#allocation8 + $0x48] sm:$0xff]
        %v736 = vld [vmem:[#allocation8 + $0x50] sm:$0xff]
        %v737 = vld [vmem:[#allocation8 + $0x58] sm:$0xff]
        %v738 = vld [vmem:[#allocation8 + $0x60] sm:$0xff]
        %v739 = vld [vmem:[#allocation8 + $0x68] sm:$0xff]
        %v740 = vld [vmem:[#allocation8 + $0x70] sm:$0xff]
        %v741 = vld [vmem:[#allocation8 + $0x78] sm:$0xff]
        %v742 = vld [vmem:[#allocation8 + $0x80] sm:$0xff]
        %v743 = vld [vmem:[#allocation8 + $0x88] sm:$0xff]
        %v744 = vld [vmem:[#allocation8 + $0x90] sm:$0xff]
        %v745 = vld [vmem:[#allocation8 + $0x98] sm:$0xff]
        %v746 = vld [vmem:[#allocation8 + $0xa0] sm:$0xff]
        %v747 = vld [vmem:[#allocation8 + $0xa8] sm:$0xff]
        %v748 = vld [vmem:[#allocation8 + $0xb0] sm:$0xff]
        %v749 = vld [vmem:[#allocation8 + $0xb8] sm:$0xff]
        %v750 = vld [vmem:[#allocation8 + $0xc0] sm:$0xff]
        %v751 = vld [vmem:[#allocation8 + $0xc8] sm:$0xff]
        %v752 = vld [vmem:[#allocation8 + $0xd0] sm:$0xff]
        %v753 = vld [vmem:[#allocation8 + $0xd8] sm:$0xff]
        %v754 = vld [vmem:[#allocation8 + $0xe0] sm:$0xff]
        %v755 = vld [vmem:[#allocation8 + $0xe8] sm:$0xff]
        %v756 = vld [vmem:[#allocation8 + $0xf0] sm:$0xff]
        %v757 = vld [vmem:[#allocation8 + $0xf8] sm:$0xff]
        %v758 = vld [vmem:[#allocation8 + $0x100] sm:$0xff]
        %v759 = vld [vmem:[#allocation8 + $0x108] sm:$0xff]
        %v760 = vld [vmem:[#allocation8 + $0x110] sm:$0xff]
        %v761 = vld [vmem:[#allocation8 + $0x118] sm:$0xff]
        %v762 = vld [vmem:[#allocation8 + $0x120] sm:$0xff]
        %v763 = vld [vmem:[#allocation8 + $0x128] sm:$0xff]
        %v764 = vld [vmem:[#allocation8 + $0x130] sm:$0xff]
        %v765 = vld [vmem:[#allocation8 + $0x138] sm:$0xff]
        %v766 = vld [vmem:[#allocation8 + $0x140] sm:$0xff]
        %v767 = vld [vmem:[#allocation8 + $0x148] sm:$0xff]
        %v768 = vld [vmem:[#allocation8 + $0x150] sm:$0xff]
        %v769 = vld [vmem:[#allocation8 + $0x158] sm:$0xff]
        %v770 = vld [vmem:[#allocation8 + $0x160] sm:$0xff]
        %v771 = vld [vmem:[#allocation8 + $0x168] sm:$0xff]
        %v772 = vld [vmem:[#allocation8 + $0x170] sm:$0xff]
        %v773 = vld [vmem:[#allocation8 + $0x178] sm:$0xff]
        %774 = vmatprep.subr.mxu0 %v727
        %775 = vmatpush1.msra.mxu0 %v726
        %776 = vmatprep.subr.mxu0 %v730
        %777 = vmatpush1.msra.mxu0 %v729
        %778 = vmatprep.subr.mxu0 %v733
        %779 = vmatpush1.msra.mxu0 %v732
        %780 = vmatprep.subr.mxu0 %v736
        %781 = vmatpush1.msra.mxu0 %v735
        %782 = vmatprep.subr.mxu0 %v739
        %783 = vmatpush1.msra.mxu0 %v738
        %784 = vmatprep.subr.mxu0 %v742
        %785 = vmatpush1.msra.mxu0 %v741
        %786 = vmatprep.subr.mxu0 %v745
        %787 = vmatpush1.msra.mxu0 %v744
        %788 = vmatprep.subr.mxu0 %v748
        %789 = vmatpush1.msra.mxu0 %v747
        %790 = vmatprep.subr.mxu0 %v751
        %791 = vmatpush1.msra.mxu0 %v750
        %792 = vmatprep.subr.mxu0 %v754
        %793 = vmatpush1.msra.mxu0 %v753
        %794 = vmatprep.subr.mxu0 %v757
        %795 = vmatpush1.msra.mxu0 %v756
        %796 = vmatprep.subr.mxu0 %v760
        %797 = vmatpush1.msra.mxu0 %v759
        %798 = vmatprep.subr.mxu0 %v763
        %799 = vmatpush1.msra.mxu0 %v762
        %800 = vmatprep.subr.mxu0 %v766
        %801 = vmatpush1.msra.mxu0 %v765
        %802 = vmatprep.subr.mxu0 %v769
        %803 = vmatpush1.msra.mxu0 %v768
        %804 = vmatprep.subr.mxu0 %v772
        %805 = vmatpush1.msra.mxu0 %v771
        %806 = vmatprep.subr.mxu0 0.0
        %807 = vmatpush1.msra.mxu0 0.0
        %808 = vmatprep.subr.mxu0 0.0
        %809 = vmatpush1.msra.mxu0 0.0
        %810 = vmatprep.subr.mxu0 0.0
        %811 = vmatpush1.msra.mxu0 0.0
        %812 = vmatprep.subr.mxu0 0.0
        %813 = vmatpush1.msra.mxu0 0.0
        %814 = vmatprep.subr.mxu0 0.0
        %815 = vmatpush1.msra.mxu0 0.0
        %816 = vmatprep.subr.mxu0 0.0
        %817 = vmatpush1.msra.mxu0 0.0
        %818 = vmatprep.subr.mxu0 0.0
        %819 = vmatpush1.msra.mxu0 0.0
        %820 = vmatprep.subr.mxu0 0.0
        %821 = vmatpush1.msra.mxu0 0.0
        %822 = vmatprep.subr.mxu0 0.0
        %823 = vmatpush1.msra.mxu0 0.0
        %824 = vmatprep.subr.mxu0 0.0
        %825 = vmatpush1.msra.mxu0 0.0
        %826 = vmatprep.subr.mxu0 0.0
        %827 = vmatpush1.msra.mxu0 0.0
        %828 = vmatprep.subr.mxu0 0.0
        %829 = vmatpush1.msra.mxu0 0.0
        %830 = vmatprep.subr.mxu0 0.0
        %831 = vmatpush1.msra.mxu0 0.0
        %832 = vmatprep.subr.mxu0 0.0
        %833 = vmatpush1.msra.mxu0 0.0
        %834 = vmatprep.subr.mxu0 0.0
        %835 = vmatpush1.msra.mxu0 0.0
        %836 = vmatprep.subr.mxu0 0.0
        %837 = vmatpush1.msra.mxu0 0.0
        %838 = vmatprep.mubr.f32.mxu0 0.0
        %839 = vmatmul.mubr.f32.gmra.mrb[0].mxu0 %v719
        %v840 = vpop.f32.mrb[0].mxu0
        %v841 = vadd.f32 0.0, %v840
        %v842 = vpop.f32.mrb[0].mxu0
        %v843 = vadd.f32 0.0, %v842
        %844 = vdwg.mxu0
        %845 = vmatprep.subr.mxu0 0.0
        %846 = vmatpush1.msra.mxu0 %v728
        %847 = vmatprep.subr.mxu0 0.0
        %848 = vmatpush1.msra.mxu0 %v731
        %849 = vmatprep.subr.mxu0 0.0
        %850 = vmatpush1.msra.mxu0 %v734
        %851 = vmatprep.subr.mxu0 0.0
        %852 = vmatpush1.msra.mxu0 %v737
        %853 = vmatprep.subr.mxu0 0.0
        %854 = vmatpush1.msra.mxu0 %v740
        %855 = vmatprep.subr.mxu0 0.0
        %856 = vmatpush1.msra.mxu0 %v743
        %857 = vmatprep.subr.mxu0 0.0
        %858 = vmatpush1.msra.mxu0 %v746
        %859 = vmatprep.subr.mxu0 0.0
        %860 = vmatpush1.msra.mxu0 %v749
        %861 = vmatprep.subr.mxu0 0.0
        %862 = vmatpush1.msra.mxu0 %v752
        %863 = vmatprep.subr.mxu0 0.0
        %864 = vmatpush1.msra.mxu0 %v755
        %865 = vmatprep.subr.mxu0 0.0
        %866 = vmatpush1.msra.mxu0 %v758
        %867 = vmatprep.subr.mxu0 0.0
        %868 = vmatpush1.msra.mxu0 %v761
        %869 = vmatprep.subr.mxu0 0.0
        %870 = vmatpush1.msra.mxu0 %v764
        %871 = vmatprep.subr.mxu0 0.0
        %872 = vmatpush1.msra.mxu0 %v767
        %873 = vmatprep.subr.mxu0 0.0
        %874 = vmatpush1.msra.mxu0 %v770
        %875 = vmatprep.subr.mxu0 0.0
        %876 = vmatpush1.msra.mxu0 %v773
        %877 = vmatprep.subr.mxu0 0.0
        %878 = vmatpush1.msra.mxu0 0.0
        %879 = vmatprep.subr.mxu0 0.0
        %880 = vmatpush1.msra.mxu0 0.0
        %881 = vmatprep.subr.mxu0 0.0
        %882 = vmatpush1.msra.mxu0 0.0
        %883 = vmatprep.subr.mxu0 0.0
        %884 = vmatpush1.msra.mxu0 0.0
        %885 = vmatprep.subr.mxu0 0.0
        %886 = vmatpush1.msra.mxu0 0.0
        %887 = vmatprep.subr.mxu0 0.0
        %888 = vmatpush1.msra.mxu0 0.0
        %889 = vmatprep.subr.mxu0 0.0
        %890 = vmatpush1.msra.mxu0 0.0
        %891 = vmatprep.subr.mxu0 0.0
        %892 = vmatpush1.msra.mxu0 0.0
        %893 = vmatprep.subr.mxu0 0.0
        %894 = vmatpush1.msra.mxu0 0.0
        %895 = vmatprep.subr.mxu0 0.0
        %896 = vmatpush1.msra.mxu0 0.0
        %897 = vmatprep.subr.mxu0 0.0
        %898 = vmatpush1.msra.mxu0 0.0
        %899 = vmatprep.subr.mxu0 0.0
        %900 = vmatpush1.msra.mxu0 0.0
        %901 = vmatprep.subr.mxu0 0.0
        %902 = vmatpush1.msra.mxu0 0.0
        %903 = vmatprep.subr.mxu0 0.0
        %904 = vmatpush1.msra.mxu0 0.0
        %905 = vmatprep.subr.mxu0 0.0
        %906 = vmatpush1.msra.mxu0 0.0
        %907 = vmatprep.subr.mxu0 0.0
        %908 = vmatpush1.msra.mxu0 0.0
        %909 = vmatprep.mubr.f32.mxu0 0.0
        %910 = vmatmul.mubr.f32.gmra.mrb[0].mxu0 %v719
        %v911 = vpop.f32.mrb[0].mxu0
        %v912 = vadd.f32 0.0, %v911
        %v913 = vpop.f32.mrb[0].mxu0
        %914 = vdwg.mxu0
        %v915 = vadd.f32 %v723, %v841
        %v916 = vxor.u32 %v915, 2147483648
        %v917 = vmul.f32 %v916, 1.442695
        %v918 = vpow.pop %v917
        %v919 = vadd.f32 %v918, 1.0
        %v920 = vrcp.pop %v919
        %v921 = vmul.f32 1.0, %v920
        %v922 = vadd.f32 %v724, %v843
        %v923 = vxor.u32 %v922, 2147483648
        %v924 = vmul.f32 %v923, 1.442695
        %v925 = vpow.pop %v924
        %v926 = vadd.f32 %v925, 1.0
        %v927 = vrcp.pop %v926
        %v928 = vmul.f32 1.0, %v927
        %v929 = vld [vmem:[%s3] sm:$0x1]
        %v931 = vlaneseq
        %v932 = vshrl.u32 %v931, 7
        %v933 = vsub.s32 0, %v932
        %v934 = vrot.slane %v929, %v933
        %v936 = vadd.f32 %v912, %v934
        %v937 = vmul.f32 %v921, %v936
        %v938 = vadd.f32 %v725, %v937
        %v939 = vtanh.pop %v938
        %v940 = vsub.f32 %v719, %v939
        %v941 = vmul.f32 %v928, %v940
        %v942 = vadd.f32 %v939, %v941
        %s943 = scalar_lea.vmem %s268, 16 [#allocation9]
        %944 = vst [vmem:[%s943] sm:$0xff] %v942
        %s945 = scalar_lea.vmem %s236, 72 [#allocation3]
        %v946 = vld [vmem:[%s945] sm:$0xff]
        %v947 = vld [vmem:[%s945 + $0x8] sm:$0xff]
        %v948 = vld [vmem:[%s945 + $0x10] sm:$0xff]
        %v949 = vld [vmem:[#allocation8] sm:$0xff]
        %v950 = vld [vmem:[#allocation8 + $0x8] sm:$0xff]
        %v951 = vld [vmem:[#allocation8 + $0x10] sm:$0xff]
        %v952 = vld [vmem:[#allocation8 + $0x18] sm:$0xff]
        %v953 = vld [vmem:[#allocation8 + $0x20] sm:$0xff]
        %v954 = vld [vmem:[#allocation8 + $0x28] sm:$0xff]
        %v955 = vld [vmem:[#allocation8 + $0x30] sm:$0xff]
        %v956 = vld [vmem:[#allocation8 + $0x38] sm:$0xff]
        %v957 = vld [vmem:[#allocation8 + $0x40] sm:$0xff]
        %v958 = vld [vmem:[#allocation8 + $0x48] sm:$0xff]
        %v959 = vld [vmem:[#allocation8 + $0x50] sm:$0xff]
        %v960 = vld [vmem:[#allocation8 + $0x58] sm:$0xff]
        %v961 = vld [vmem:[#allocation8 + $0x60] sm:$0xff]
        %v962 = vld [vmem:[#allocation8 + $0x68] sm:$0xff]
        %v963 = vld [vmem:[#allocation8 + $0x70] sm:$0xff]
        %v964 = vld [vmem:[#allocation8 + $0x78] sm:$0xff]
        %v965 = vld [vmem:[#allocation8 + $0x80] sm:$0xff]
        %v966 = vld [vmem:[#allocation8 + $0x88] sm:$0xff]
        %v967 = vld [vmem:[#allocation8 + $0x90] sm:$0xff]
        %v968 = vld [vmem:[#allocation8 + $0x98] sm:$0xff]
        %v969 = vld [vmem:[#allocation8 + $0xa0] sm:$0xff]
        %v970 = vld [vmem:[#allocation8 + $0xa8] sm:$0xff]
        %v971 = vld [vmem:[#allocation8 + $0xb0] sm:$0xff]
        %v972 = vld [vmem:[#allocation8 + $0xb8] sm:$0xff]
        %v973 = vld [vmem:[#allocation8 + $0xc0] sm:$0xff]
        %v974 = vld [vmem:[#allocation8 + $0xc8] sm:$0xff]
        %v975 = vld [vmem:[#allocation8 + $0xd0] sm:$0xff]
        %v976 = vld [vmem:[#allocation8 + $0xd8] sm:$0xff]
        %v977 = vld [vmem:[#allocation8 + $0xe0] sm:$0xff]
        %v978 = vld [vmem:[#allocation8 + $0xe8] sm:$0xff]
        %v979 = vld [vmem:[#allocation8 + $0xf0] sm:$0xff]
        %v980 = vld [vmem:[#allocation8 + $0xf8] sm:$0xff]
        %v981 = vld [vmem:[#allocation8 + $0x100] sm:$0xff]
        %v982 = vld [vmem:[#allocation8 + $0x108] sm:$0xff]
        %v983 = vld [vmem:[#allocation8 + $0x110] sm:$0xff]
        %v984 = vld [vmem:[#allocation8 + $0x118] sm:$0xff]
        %v985 = vld [vmem:[#allocation8 + $0x120] sm:$0xff]
        %v986 = vld [vmem:[#allocation8 + $0x128] sm:$0xff]
        %v987 = vld [vmem:[#allocation8 + $0x130] sm:$0xff]
        %v988 = vld [vmem:[#allocation8 + $0x138] sm:$0xff]
        %v989 = vld [vmem:[#allocation8 + $0x140] sm:$0xff]
        %v990 = vld [vmem:[#allocation8 + $0x148] sm:$0xff]
        %v991 = vld [vmem:[#allocation8 + $0x150] sm:$0xff]
        %v992 = vld [vmem:[#allocation8 + $0x158] sm:$0xff]
        %v993 = vld [vmem:[#allocation8 + $0x160] sm:$0xff]
        %v994 = vld [vmem:[#allocation8 + $0x168] sm:$0xff]
        %v995 = vld [vmem:[#allocation8 + $0x170] sm:$0xff]
        %v996 = vld [vmem:[#allocation8 + $0x178] sm:$0xff]
        %997 = vmatprep.subr.mxu0 %v950
        %998 = vmatpush1.msra.mxu0 %v949
        %999 = vmatprep.subr.mxu0 %v953
        %1000 = vmatpush1.msra.mxu0 %v952
        %1001 = vmatprep.subr.mxu0 %v956
        %1002 = vmatpush1.msra.mxu0 %v955
        %1003 = vmatprep.subr.mxu0 %v959
        %1004 = vmatpush1.msra.mxu0 %v958
        %1005 = vmatprep.subr.mxu0 %v962
        %1006 = vmatpush1.msra.mxu0 %v961
        %1007 = vmatprep.subr.mxu0 %v965
        %1008 = vmatpush1.msra.mxu0 %v964
        %1009 = vmatprep.subr.mxu0 %v968
        %1010 = vmatpush1.msra.mxu0 %v967
        %1011 = vmatprep.subr.mxu0 %v971
        %1012 = vmatpush1.msra.mxu0 %v970
        %1013 = vmatprep.subr.mxu0 %v974
        %1014 = vmatpush1.msra.mxu0 %v973
        %1015 = vmatprep.subr.mxu0 %v977
        %1016 = vmatpush1.msra.mxu0 %v976
        %1017 = vmatprep.subr.mxu0 %v980
        %1018 = vmatpush1.msra.mxu0 %v979
        %1019 = vmatprep.subr.mxu0 %v983
        %1020 = vmatpush1.msra.mxu0 %v982
        %1021 = vmatprep.subr.mxu0 %v986
        %1022 = vmatpush1.msra.mxu0 %v985
        %1023 = vmatprep.subr.mxu0 %v989
        %1024 = vmatpush1.msra.mxu0 %v988
        %1025 = vmatprep.subr.mxu0 %v992
        %1026 = vmatpush1.msra.mxu0 %v991
        %1027 = vmatprep.subr.mxu0 %v995
        %1028 = vmatpush1.msra.mxu0 %v994
        %1029 = vmatprep.subr.mxu0 0.0
        %1030 = vmatpush1.msra.mxu0 0.0
        %1031 = vmatprep.subr.mxu0 0.0
        %1032 = vmatpush1.msra.mxu0 0.0
        %1033 = vmatprep.subr.mxu0 0.0
        %1034 = vmatpush1.msra.mxu0 0.0
        %1035 = vmatprep.subr.mxu0 0.0
        %1036 = vmatpush1.msra.mxu0 0.0
        %1037 = vmatprep.subr.mxu0 0.0
        %1038 = vmatpush1.msra.mxu0 0.0
        %1039 = vmatprep.subr.mxu0 0.0
        %1040 = vmatpush1.msra.mxu0 0.0
        %1041 = vmatprep.subr.mxu0 0.0
        %1042 = vmatpush1.msra.mxu0 0.0
        %1043 = vmatprep.subr.mxu0 0.0
        %1044 = vmatpush1.msra.mxu0 0.0
        %1045 = vmatprep.subr.mxu0 0.0
        %1046 = vmatpush1.msra.mxu0 0.0
        %1047 = vmatprep.subr.mxu0 0.0
        %1048 = vmatpush1.msra.mxu0 0.0
        %1049 = vmatprep.subr.mxu0 0.0
        %1050 = vmatpush1.msra.mxu0 0.0
        %1051 = vmatprep.subr.mxu0 0.0
        %1052 = vmatpush1.msra.mxu0 0.0
        %1053 = vmatprep.subr.mxu0 0.0
        %1054 = vmatpush1.msra.mxu0 0.0
        %1055 = vmatprep.subr.mxu0 0.0
        %1056 = vmatpush1.msra.mxu0 0.0
        %1057 = vmatprep.subr.mxu0 0.0
        %1058 = vmatpush1.msra.mxu0 0.0
        %1059 = vmatprep.subr.mxu0 0.0
        %1060 = vmatpush1.msra.mxu0 0.0
        %1061 = vmatprep.mubr.f32.mxu0 0.0
        %1062 = vmatmul.mubr.f32.gmra.mrb[0].mxu0 %v942
        %v1063 = vpop.f32.mrb[0].mxu0
        %v1064 = vadd.f32 0.0, %v1063
        %v1065 = vpop.f32.mrb[0].mxu0
        %v1066 = vadd.f32 0.0, %v1065
        %1067 = vdwg.mxu0
        %1068 = vmatprep.subr.mxu0 0.0
        %1069 = vmatpush1.msra.mxu0 %v951
        %1070 = vmatprep.subr.mxu0 0.0
        %1071 = vmatpush1.msra.mxu0 %v954
        %1072 = vmatprep.subr.mxu0 0.0
        %1073 = vmatpush1.msra.mxu0 %v957
        %1074 = vmatprep.subr.mxu0 0.0
        %1075 = vmatpush1.msra.mxu0 %v960
        %1076 = vmatprep.subr.mxu0 0.0
        %1077 = vmatpush1.msra.mxu0 %v963
        %1078 = vmatprep.subr.mxu0 0.0
        %1079 = vmatpush1.msra.mxu0 %v966
        %1080 = vmatprep.subr.mxu0 0.0
        %1081 = vmatpush1.msra.mxu0 %v969
        %1082 = vmatprep.subr.mxu0 0.0
        %1083 = vmatpush1.msra.mxu0 %v972
        %1084 = vmatprep.subr.mxu0 0.0
        %1085 = vmatpush1.msra.mxu0 %v975
        %1086 = vmatprep.subr.mxu0 0.0
        %1087 = vmatpush1.msra.mxu0 %v978
        %1088 = vmatprep.subr.mxu0 0.0
        %1089 = vmatpush1.msra.mxu0 %v981
        %1090 = vmatprep.subr.mxu0 0.0
        %1091 = vmatpush1.msra.mxu0 %v984
        %1092 = vmatprep.subr.mxu0 0.0
        %1093 = vmatpush1.msra.mxu0 %v987
        %1094 = vmatprep.subr.mxu0 0.0
        %1095 = vmatpush1.msra.mxu0 %v990
        %1096 = vmatprep.subr.mxu0 0.0
        %1097 = vmatpush1.msra.mxu0 %v993
        %1098 = vmatprep.subr.mxu0 0.0
        %1099 = vmatpush1.msra.mxu0 %v996
        %1100 = vmatprep.subr.mxu0 0.0
        %1101 = vmatpush1.msra.mxu0 0.0
        %1102 = vmatprep.subr.mxu0 0.0
        %1103 = vmatpush1.msra.mxu0 0.0
        %1104 = vmatprep.subr.mxu0 0.0
        %1105 = vmatpush1.msra.mxu0 0.0
        %1106 = vmatprep.subr.mxu0 0.0
        %1107 = vmatpush1.msra.mxu0 0.0
        %1108 = vmatprep.subr.mxu0 0.0
        %1109 = vmatpush1.msra.mxu0 0.0
        %1110 = vmatprep.subr.mxu0 0.0
        %1111 = vmatpush1.msra.mxu0 0.0
        %1112 = vmatprep.subr.mxu0 0.0
        %1113 = vmatpush1.msra.mxu0 0.0
        %1114 = vmatprep.subr.mxu0 0.0
        %1115 = vmatpush1.msra.mxu0 0.0
        %1116 = vmatprep.subr.mxu0 0.0
        %1117 = vmatpush1.msra.mxu0 0.0
        %1118 = vmatprep.subr.mxu0 0.0
        %1119 = vmatpush1.msra.mxu0 0.0
        %1120 = vmatprep.subr.mxu0 0.0
        %1121 = vmatpush1.msra.mxu0 0.0
        %1122 = vmatprep.subr.mxu0 0.0
        %1123 = vmatpush1.msra.mxu0 0.0
        %1124 = vmatprep.subr.mxu0 0.0
        %1125 = vmatpush1.msra.mxu0 0.0
        %1126 = vmatprep.subr.mxu0 0.0
        %1127 = vmatpush1.msra.mxu0 0.0
        %1128 = vmatprep.subr.mxu0 0.0
        %1129 = vmatpush1.msra.mxu0 0.0
        %1130 = vmatprep.subr.mxu0 0.0
        %1131 = vmatpush1.msra.mxu0 0.0
        %1132 = vmatprep.mubr.f32.mxu0 0.0
        %1133 = vmatmul.mubr.f32.gmra.mrb[0].mxu0 %v942
        %v1134 = vpop.f32.mrb[0].mxu0
        %v1135 = vadd.f32 0.0, %v1134
        %v1136 = vpop.f32.mrb[0].mxu0
        %1137 = vdwg.mxu0
        %v1138 = vadd.f32 %v946, %v1064
        %v1139 = vxor.u32 %v1138, 2147483648
        %v1140 = vmul.f32 %v1139, 1.442695
        %v1141 = vpow.pop %v1140
        %v1142 = vadd.f32 %v1141, 1.0
        %v1143 = vrcp.pop %v1142
        %v1144 = vmul.f32 1.0, %v1143
        %v1145 = vadd.f32 %v947, %v1066
        %v1146 = vxor.u32 %v1145, 2147483648
        %v1147 = vmul.f32 %v1146, 1.442695
        %v1148 = vpow.pop %v1147
        %v1149 = vadd.f32 %v1148, 1.0
        %v1150 = vrcp.pop %v1149
        %v1151 = vmul.f32 1.0, %v1150
        %v1152 = vld [vmem:[%s3] sm:$0x1]
        %v1154 = vlaneseq
        %v1155 = vshrl.u32 %v1154, 7
        %v1156 = vsub.s32 0, %v1155
        %v1157 = vrot.slane %v1152, %v1156
        %v1159 = vadd.f32 %v1135, %v1157
        %v1160 = vmul.f32 %v1144, %v1159
        %v1161 = vadd.f32 %v948, %v1160
        %v1162 = vtanh.pop %v1161
        %v1163 = vsub.f32 %v942, %v1162
        %v1164 = vmul.f32 %v1151, %v1163
        %v1165 = vadd.f32 %v1162, %v1164
        %s1166 = scalar_lea.vmem %s268, 24 [#allocation9]
        %1167 = vst [vmem:[%s1166] sm:$0xff] %v1165
        %1168 = vst [vmem:[#allocation2] sm:$0xff] %v1165
        %s1169 = sand.u32 %s140, 1
        %s1170 = scalar_lea.sflag [#allocation5], %s1169
        %s1171 = sand.u32 %s140, 1
        %s1172 = smul.addr %s1171, 32
        %s1173 = scalar_lea.vmem [#allocation9], %s1172
        // Predicated region
        $region53: #{tpu_custom_call.1} parent=35 // pred_check
          %p1174 = pneg %p150
        $region54: #{tpu_custom_call.1} parent=35 // pred_check_branch
          %1176 = sbr.rel (%p1174) target = $region56
        $region55: #{tpu_custom_call.1} parent=35 // pred_region
          %s1177 = smul.u32 4, %s27
          %s1179 = ssub.s32 512, 512
          %1180 = vsyncadd %s1170, %s1179
          %s1181 = sadd.s32 %s26, %s1177
          %s1182 = smul.addr %s1181, 128
          %s1183 = scalar_lea.hbm %s4, %s1182
          %s1184 = sshll.u32 %s1173, 4
          %s1185 = int_to_ptr.vmem [resolvable:$true] %s1184
          %1190 = dma.vmem_to_hbm [thread:$0]  %s1185, 512, %s1183, %s1170, 128, 128, 8
        $region56: #{tpu_custom_call.1} parent=35 // pred_fallthru
          _
      $region36: #{tpu_custom_call.1} parent=5 // pred_fallthru
        _
      %p1191 = scmp.le.s32.totalorder 2, %s17
      // Predicated region
      $region57: #{tpu_custom_call.1} parent=5 // pred_check
        %p1192 = pneg %p1191
      $region58: #{tpu_custom_call.1} parent=5 // pred_check_branch
        %1194 = sbr.rel (%p1192) target = $region60
      $region59: #{tpu_custom_call.1} parent=5 // pred_region
        %s1195 = ssub.s32 %s17, 2
        // Predicated region
        $region61: #{tpu_custom_call.1} parent=59 // pred_check
          %p1196 = pneg %p156
        $region62: #{tpu_custom_call.1} parent=59 // pred_check_branch
          %1198 = sbr.rel (%p1196) target = $region64
        $region63: #{tpu_custom_call.1} parent=59 // pred_region
          %s1199 = sand.u32 %s141, 1
          %s1200 = scalar_lea.sflag [#allocation5], %s1199
          %s1201 = sand.u32 %s141, 1
          %s1202 = smul.addr %s1201, 32
          %s1203 = scalar_lea.vmem [#allocation9], %s1202
          %1204 = dma.done %s1200, 512
        $region64: #{tpu_custom_call.1} parent=59 // pred_fallthru
          _
      $region60: #{tpu_custom_call.1} parent=5 // pred_fallthru
        _
    $region6: #{tpu_custom_call.1} parent=1 // loop_footer
      %s21 = sadd.s32 1, %s17
    $region7: #{tpu_custom_call.1} parent=1 // loop_footer_branch
      %16 = sbr.rel target = $region3
    $region8: #{tpu_custom_call.1} parent=1 // loop_exit
      _
    %1205 = vsyncpa [#allocation4], 1
    %s1206 = scalar_lea.sflag [#allocation4], 1
    %1207 = vsyncpa %s1206, 1
    %1208 = vsyncpa [#allocation7], 1
    %1209 = vsyncpa [#allocation5], 1
    %s1210 = scalar_lea.sflag [#allocation5], 1
    %1211 = vsyncpa %s1210, 1

</llo_original>
